<compile_context>
chip_gen: v5e
topology: v5e:2x2
jax: 0.10.0
libtpu: 0.0.40
codegen_flags: <defaults>
</compile_context>

<pallas_src>
import functools

import jax
import jax.numpy as jnp
from jax.experimental import pallas as pl
from jax.experimental.pallas import tpu as pltpu

PAD = 128  # lane-aligned halo width for the flat depthwise scratch


def _make_kernel(H, W, Cin, hidden, oup, expand, use_res):
    """Fused inverted-residual kernel for one batch element, (C, H*W) layout."""
    HW = H * W

    def kernel(x_ref, *refs):
        i = 0
        if expand:
            w1_ref, s1_ref, b1_ref = refs[0], refs[1], refs[2]
            i = 3
        wdw_ref = refs[i + 0]
        s2_ref = refs[i + 1]
        b2_ref = refs[i + 2]
        w3_ref = refs[i + 3]
        s3_ref = refs[i + 4]
        b3_ref = refs[i + 5]
        o_ref = refs[i + 6]
        hp_ref = refs[i + 7]          # VMEM scratch: (hidden, PAD + HW + PAD)

        x = x_ref[0].astype(jnp.float32)                      # (Cin, HW), lane-dense

        # ---- 1x1 expand conv + BN + ReLU: (hidden, Cin) @ (Cin, HW) -> (hidden, HW)
        if expand:
            h = jnp.dot(w1_ref[...], x, preferred_element_type=jnp.float32)
            h = jnp.maximum(h * s1_ref[...] + b1_ref[...], 0.0)
        else:
            h = x

        # ---- depthwise 3x3, stride 1, zero padding 1, on the flat lane axis ----
        # Zero only the halo (the interior is a single lane-aligned full store).
        hp_ref[:, :PAD] = jnp.zeros((hidden, PAD), jnp.float32)
        hp_ref[:, PAD + HW:] = jnp.zeros((hidden, PAD), jnp.float32)
        hp_ref[:, PAD:PAD + HW] = h                           # aligned, unmasked store

        # Column-boundary masks (row over/underflow falls into the zero halo).
        col = jax.lax.broadcasted_iota(jnp.int32, (1, HW), 1) % W
        not_first_col = (col != 0).astype(jnp.float32)        # valid for dw = -1
        not_last_col = (col != W - 1).astype(jnp.float32)     # valid for dw = +1

        wdw = wdw_ref[...].astype(jnp.float32)                # (hidden, 9), hoisted load

        acc = jnp.zeros((hidden, HW), jnp.float32)
        for kh in range(3):
            for kw in range(3):
                s = (kh - 1) * W + (kw - 1)                   # flat lane shift of this tap
                tap = hp_ref[:, PAD + s:PAD + s + HW]         # (hidden, HW)
                wk = wdw[:, kh * 3 + kw:kh * 3 + kw + 1]      # (hidden, 1)
                contrib = tap * wk
                if kw == 0:
                    contrib = contrib * not_first_col
                elif kw == 2:
                    contrib = contrib * not_last_col
                acc = acc + contrib
        acc = jnp.maximum(acc * s2_ref[...] + b2_ref[...], 0.0)

        # ---- 1x1 projection + BN: (oup, hidden) @ (hidden, HW) -> (oup, HW) ----
        y = jnp.dot(w3_ref[...], acc, preferred_element_type=jnp.float32)
        y = y * s3_ref[...] + b3_ref[...]

        # ---- residual ----
        if use_res:
            y = y + x

        o_ref[0] = y                                          # lane-dense (oup, HW) store

    return kernel


def inverted_residual_forward(x_nchw, params, *, inp, oup, stride, expand_ratio):
    assert stride in (1, 2)
    assert stride == 1, "only stride=1 implemented (see TODO)"
    hidden = int(round(inp * expand_ratio))
    expand = expand_ratio != 1
    use_res = (stride == 1) and (inp == oup)

    N, C, H, W = x_nchw.shape
    assert C == inp
    HW = H * W
    # NCHW is already the right (channels-on-sublane, spatial-on-lane) layout:
    # only a free reshape, no transpose.
    x = x_nchw.reshape(N, C, HW).astype(jnp.float32)

    kernel = _make_kernel(H, W, C, hidden, oup, expand, use_res)

    def full_spec(arr):
        nd = arr.ndim
        return pl.BlockSpec(arr.shape, lambda n, _nd=nd: (0,) * _nd)

    names = (("w1", "s1", "b1") if expand else ()) + ("wdw", "s2", "b2", "w3", "s3", "b3")
    weights = [params[name] for name in names]
    weight_specs = [full_spec(w) for w in weights]

    # grid over batch, marked "parallel" so v7x's two TensorCores both get work.
    # (At production MobileNet shapes, tile H into row bands and set
    #  vmem_limit_bytes explicitly for v7x's smaller VMEM.)
    out_flat = pl.pallas_call(
        kernel,
        out_shape=jax.ShapeDtypeStruct((N, oup, HW), jnp.float32),
        grid_spec=pltpu.PrefetchScalarGridSpec(
            num_scalar_prefetch=0,
            grid=(N,),
            in_specs=[pl.BlockSpec((1, C, HW), lambda n: (n, 0, 0))] + weight_specs,
            out_specs=pl.BlockSpec((1, oup, HW), lambda n: (n, 0, 0)),
            scratch_shapes=[pltpu.VMEM((hidden, PAD + HW + PAD), jnp.float32)],
        ),
        compiler_params=pltpu.CompilerParams(
            dimension_semantics=("parallel",)),
    )(x, *weights)

    return out_flat.reshape(N, oup, H, W)


def make_params(key, inp, oup, expand_ratio):
    """Deterministic synthetic parameters; BatchNorm (eval mode) folded to scale/bias.

    Weight layouts (pre-transposed for the (C, HW) kernel):
      w1  : (hidden, inp)   <- torch (hidden, inp, 1, 1)
      wdw : (hidden, 9)     <- torch (hidden, 1, 3, 3)
      w3  : (oup, hidden)   <- torch (oup, hidden, 1, 1)
      s*, b* : (C, 1) folded BN scale/bias
    """
    hidden = int(round(inp * expand_ratio))
    expand = expand_ratio != 1
    eps = 1e-5
    ks = jax.random.split(key, 9)
    p = {}

    def fold_bn(kg, kb, c):
        gamma = 1.0 + 0.1 * jax.random.normal(kg, (c, 1), jnp.float32)
        beta = 0.1 * jax.random.normal(kb, (c, 1), jnp.float32)
        mean = jnp.zeros((c, 1), jnp.float32)    # PyTorch default running stats
        var = jnp.ones((c, 1), jnp.float32)
        scale = gamma / jnp.sqrt(var + eps)
        bias = beta - mean * scale
        return scale, bias

    if expand:
        p["w1"] = 0.2 * jax.random.normal(ks[0], (hidden, inp), jnp.float32)
        p["s1"], p["b1"] = fold_bn(ks[1], ks[2], hidden)
    p["wdw"] = 0.2 * jax.random.normal(ks[3], (hidden, 9), jnp.float32)
    p["s2"], p["b2"] = fold_bn(ks[4], ks[5], hidden)
    p["w3"] = 0.2 * jax.random.normal(ks[6], (oup, hidden), jnp.float32)
    p["s3"], p["b3"] = fold_bn(ks[7], ks[8], oup)
    return p


def reference_forward(x_nchw, p, *, inp, oup, stride, expand_ratio):
    """Pure-JAX reference of the same (eval-mode) math, NCHW, for verification."""
    hidden = int(round(inp * expand_ratio))
    expand = expand_ratio != 1
    use_res = (stride == 1) and (inp == oup)
    N, C, H, W = x_nchw.shape
    x = x_nchw.astype(jnp.float32)
    if expand:
        h = jnp.einsum("dc,nchw->ndhw", p["w1"], x)
        h = jnp.maximum(h * p["s1"].reshape(1, hidden, 1, 1)
                        + p["b1"].reshape(1, hidden, 1, 1), 0.0)
    else:
        h = x
    hp = jnp.pad(h, ((0, 0), (0, 0), (1, 1), (1, 1)))
    acc = jnp.zeros((N, hidden, H, W), jnp.float32)
    for kh in range(3):
        for kw in range(3):
            acc = acc + (hp[:, :, kh:kh + H, kw:kw + W]
                         * p["wdw"][:, kh * 3 + kw].reshape(1, hidden, 1, 1))
    acc = jnp.maximum(acc * p["s2"].reshape(1, hidden, 1, 1)
                      + p["b2"].reshape(1, hidden, 1, 1), 0.0)
    y = jnp.einsum("od,ndhw->nohw", p["w3"], acc)
    y = y * p["s3"].reshape(1, oup, 1, 1) + p["b3"].reshape(1, oup, 1, 1)
    if use_res:
        y = y + x
    return y


if __name__ == "__main__":
    # Module config: InvertedResidual(inp=8, oup=8, stride=1, expand_ratio=4)
    # -> hidden_dim=32, residual connection active.
    inp, oup, stride, expand_ratio = 8, 8, 1, 4
    N, H, W = 2, 16, 16

    key = jax.random.PRNGKey(0)
    kx, kp = jax.random.split(key)
    x = jax.random.normal(kx, (N, inp, H, W), jnp.float32)   # NCHW like PyTorch
    params = make_params(kp, inp, oup, expand_ratio)

    fwd = functools.partial(inverted_residual_forward,
                            inp=inp, oup=oup, stride=stride,
                            expand_ratio=expand_ratio)
    out = fwd(x, params)
    out = jax.block_until_ready(out)

    ref = reference_forward(x, params, inp=inp, oup=oup, stride=stride,
                            expand_ratio=expand_ratio)
    assert out.shape == (N, oup, H, W)
    assert jnp.allclose(out, ref, rtol=1e-4, atol=1e-4), "mismatch vs JAX reference"

    print("KERNEL_OK")
</pallas_src>

<mosaic_0001>
module attributes {stable_mosaic.version = 11 : i64} {
  func.func @kernel(%arg0: i32, %arg1: memref<1x8x256xf32, #tpu.memory_space<vmem>>, %arg2: memref<32x8xf32, #tpu.memory_space<vmem>>, %arg3: memref<32x1xf32, #tpu.memory_space<vmem>>, %arg4: memref<32x1xf32, #tpu.memory_space<vmem>>, %arg5: memref<32x9xf32, #tpu.memory_space<vmem>>, %arg6: memref<32x1xf32, #tpu.memory_space<vmem>>, %arg7: memref<32x1xf32, #tpu.memory_space<vmem>>, %arg8: memref<8x32xf32, #tpu.memory_space<vmem>>, %arg9: memref<8x1xf32, #tpu.memory_space<vmem>>, %arg10: memref<8x1xf32, #tpu.memory_space<vmem>>, %arg11: memref<1x8x256xf32, #tpu.memory_space<vmem>>, %arg12: memref<32x512xf32, #tpu.memory_space<vmem>>) attributes {dimension_semantics = [#tpu.dimension_semantics<parallel>], iteration_bounds = array<i64: 2>, scalar_prefetch = 0 : i64, scratch_operands = 1 : i64, tpu.core_type = #tpu.core_type<tc>, window_params = [{transform_indices = @transform_0, window_bounds = array<i64: 1, 8, 256>}, {pipeline_mode = #tpu.pipeline_mode<synchronous>, transform_indices = @transform_1, window_bounds = array<i64: 32, 8>}, {pipeline_mode = #tpu.pipeline_mode<synchronous>, transform_indices = @transform_2, window_bounds = array<i64: 32, 1>}, {pipeline_mode = #tpu.pipeline_mode<synchronous>, transform_indices = @transform_3, window_bounds = array<i64: 32, 1>}, {pipeline_mode = #tpu.pipeline_mode<synchronous>, transform_indices = @transform_4, window_bounds = array<i64: 32, 9>}, {pipeline_mode = #tpu.pipeline_mode<synchronous>, transform_indices = @transform_5, window_bounds = array<i64: 32, 1>}, {pipeline_mode = #tpu.pipeline_mode<synchronous>, transform_indices = @transform_6, window_bounds = array<i64: 32, 1>}, {pipeline_mode = #tpu.pipeline_mode<synchronous>, transform_indices = @transform_7, window_bounds = array<i64: 8, 32>}, {pipeline_mode = #tpu.pipeline_mode<synchronous>, transform_indices = @transform_8, window_bounds = array<i64: 8, 1>}, {pipeline_mode = #tpu.pipeline_mode<synchronous>, transform_indices = @transform_9, window_bounds = array<i64: 8, 1>}, {transform_indices = @transform_10, window_bounds = array<i64: 1, 8, 256>}]} {
    %c0 = arith.constant 0 : index
    %c0_0 = arith.constant 0 : index
    %c0_1 = arith.constant 0 : index
    %0 = vector.load %arg1[%c0, %c0_0, %c0_1] : memref<1x8x256xf32, #tpu.memory_space<vmem>>, vector<1x8x256xf32>
    %1 = vector.shape_cast %0 : vector<1x8x256xf32> to vector<8x256xf32>
    %c0_2 = arith.constant 0 : index
    %c0_3 = arith.constant 0 : index
    %2 = vector.load %arg2[%c0_2, %c0_3] : memref<32x8xf32, #tpu.memory_space<vmem>>, vector<32x8xf32>
    %cst = arith.constant dense<0.000000e+00> : vector<32x256xf32>
    %3 = tpu.matmul %2, %1, %cst {dimension_numbers = #tpu.dot_dimension_numbers<[1], [0], [0], [1], [0, 0, 1, 1], [], []>} : vector<32x8xf32>, vector<8x256xf32>, vector<32x256xf32> -> vector<32x256xf32>
    %c0_4 = arith.constant 0 : index
    %c0_5 = arith.constant 0 : index
    %4 = vector.load %arg3[%c0_4, %c0_5] : memref<32x1xf32, #tpu.memory_space<vmem>>, vector<32x1xf32>
    %5 = vector.broadcast %4 : vector<32x1xf32> to vector<32x256xf32>
    %6 = arith.mulf %3, %5 : vector<32x256xf32>
    %c0_6 = arith.constant 0 : index
    %c0_7 = arith.constant 0 : index
    %7 = vector.load %arg4[%c0_6, %c0_7] : memref<32x1xf32, #tpu.memory_space<vmem>>, vector<32x1xf32>
    %8 = vector.broadcast %7 : vector<32x1xf32> to vector<32x256xf32>
    %9 = arith.addf %6, %8 : vector<32x256xf32>
    %cst_8 = arith.constant 0.000000e+00 : f32
    %10 = vector.broadcast %cst_8 : f32 to vector<32x256xf32>
    %11 = arith.maximumf %9, %10 : vector<32x256xf32>
    %cst_9 = arith.constant 0.000000e+00 : f32
    %12 = vector.broadcast %cst_9 : f32 to vector<32x128xf32>
    %c0_10 = arith.constant 0 : index
    %c0_11 = arith.constant 0 : index
    %13 = vector.load %arg12[%c0_10, %c0_11] : memref<32x512xf32, #tpu.memory_space<vmem>>, vector<32x128xf32>
    tpu.vector_store %arg12[%c0_10, %c0_11], %12 {strides = array<i32>} : memref<32x512xf32, #tpu.memory_space<vmem>>, vector<32x128xf32>,
    %cst_12 = arith.constant 0.000000e+00 : f32
    %14 = vector.broadcast %cst_12 : f32 to vector<32x128xf32>
    %c0_13 = arith.constant 0 : index
    %c384 = arith.constant 384 : index
    %15 = vector.load %arg12[%c0_13, %c384] : memref<32x512xf32, #tpu.memory_space<vmem>>, vector<32x128xf32>
    tpu.vector_store %arg12[%c0_13, %c384], %14 {strides = array<i32>} : memref<32x512xf32, #tpu.memory_space<vmem>>, vector<32x128xf32>,
    %c0_14 = arith.constant 0 : index
    %c128 = arith.constant 128 : index
    %16 = vector.load %arg12[%c0_14, %c128] : memref<32x512xf32, #tpu.memory_space<vmem>>, vector<32x256xf32>
    tpu.vector_store %arg12[%c0_14, %c128], %11 {strides = array<i32>} : memref<32x512xf32, #tpu.memory_space<vmem>>, vector<32x256xf32>,
    %17 = tpu.iota {dimensions = array<i32: 1>} : vector<1x256xi32>
    %c16_i32 = arith.constant 16 : i32
    %c0_i32 = arith.constant 0 : i32
    %18 = arith.cmpi eq, %c16_i32, %c0_i32 : i32
    %c1_i32 = arith.constant 1 : i32
    %19 = arith.select %18, %c1_i32, %c16_i32 : i32
    %20 = vector.broadcast %19 : i32 to vector<1x256xi32>
    %21 = arith.remsi %17, %20 : vector<1x256xi32>
    %c0_i32_15 = arith.constant 0 : i32
    %22 = vector.broadcast %c0_i32_15 : i32 to vector<1x256xi32>
    %23 = arith.cmpi ne, %21, %22 : vector<1x256xi32>
    %c0_i32_16 = arith.constant 0 : i32
    %24 = vector.broadcast %c0_i32_16 : i32 to vector<1x256xi32>
    %25 = arith.cmpi slt, %21, %24 : vector<1x256xi32>
    %c0_i32_17 = arith.constant 0 : i32
    %26 = arith.cmpi slt, %19, %c0_i32_17 : i32
    %27 = vector.broadcast %26 : i1 to vector<1x256xi1>
    %28 = vector.broadcast %27 : vector<1x256xi1> to vector<1x256xi1>
    %29 = arith.xori %25, %28 : vector<1x256xi1>
    %30 = arith.andi %29, %23 : vector<1x256xi1>
    %31 = vector.broadcast %19 : i32 to vector<1x256xi32>
    %32 = arith.addi %21, %31 : vector<1x256xi32>
    %33 = arith.select %30, %32, %21 : vector<1x256xi1>, vector<1x256xi32>
    %c0_i32_18 = arith.constant 0 : i32
    %34 = vector.broadcast %c0_i32_18 : i32 to vector<1x256xi32>
    %35 = arith.cmpi ne, %33, %34 : vector<1x256xi32>
    %36 = arith.extui %35 : vector<1x256xi1> to vector<1x256xi32>
    %37 = arith.sitofp %36 : vector<1x256xi32> to vector<1x256xf32>
    %c15_i32 = arith.constant 15 : i32
    %38 = vector.broadcast %c15_i32 : i32 to vector<1x256xi32>
    %39 = arith.cmpi ne, %33, %38 : vector<1x256xi32>
    %40 = arith.extui %39 : vector<1x256xi1> to vector<1x256xi32>
    %41 = arith.sitofp %40 : vector<1x256xi32> to vector<1x256xf32>
    %c0_19 = arith.constant 0 : index
    %c0_20 = arith.constant 0 : index
    %42 = vector.load %arg5[%c0_19, %c0_20] : memref<32x9xf32, #tpu.memory_space<vmem>>, vector<32x9xf32>
    %cst_21 = arith.constant 0.000000e+00 : f32
    %43 = vector.broadcast %cst_21 : f32 to vector<32x256xf32>
    %c0_22 = arith.constant 0 : index
    %c111 = arith.constant 111 : index
    %44 = vector.load %arg12[%c0_22, %c111] : memref<32x512xf32, #tpu.memory_space<vmem>>, vector<32x256xf32>
    %45 = vector.extract_strided_slice %42 {offsets = [0, 0], sizes = [32, 1], strides = [1, 1]} : vector<32x9xf32> to vector<32x1xf32>
    %46 = vector.broadcast %45 : vector<32x1xf32> to vector<32x256xf32>
    %47 = arith.mulf %44, %46 : vector<32x256xf32>
    %48 = vector.broadcast %37 : vector<1x256xf32> to vector<32x256xf32>
    %49 = arith.mulf %47, %48 : vector<32x256xf32>
    %50 = arith.addf %43, %49 : vector<32x256xf32>
    %c0_23 = arith.constant 0 : index
    %c112 = arith.constant 112 : index
    %51 = vector.load %arg12[%c0_23, %c112] : memref<32x512xf32, #tpu.memory_space<vmem>>, vector<32x256xf32>
    %52 = vector.extract_strided_slice %42 {offsets = [0, 1], sizes = [32, 1], strides = [1, 1]} : vector<32x9xf32> to vector<32x1xf32>
    %53 = vector.broadcast %52 : vector<32x1xf32> to vector<32x256xf32>
    %54 = arith.mulf %51, %53 : vector<32x256xf32>
    %55 = arith.addf %50, %54 : vector<32x256xf32>
    %c0_24 = arith.constant 0 : index
    %c113 = arith.constant 113 : index
    %56 = vector.load %arg12[%c0_24, %c113] : memref<32x512xf32, #tpu.memory_space<vmem>>, vector<32x256xf32>
    %57 = vector.extract_strided_slice %42 {offsets = [0, 2], sizes = [32, 1], strides = [1, 1]} : vector<32x9xf32> to vector<32x1xf32>
    %58 = vector.broadcast %57 : vector<32x1xf32> to vector<32x256xf32>
    %59 = arith.mulf %56, %58 : vector<32x256xf32>
    %60 = vector.broadcast %41 : vector<1x256xf32> to vector<32x256xf32>
    %61 = arith.mulf %59, %60 : vector<32x256xf32>
    %62 = arith.addf %55, %61 : vector<32x256xf32>
    %c0_25 = arith.constant 0 : index
    %c127 = arith.constant 127 : index
    %63 = vector.load %arg12[%c0_25, %c127] : memref<32x512xf32, #tpu.memory_space<vmem>>, vector<32x256xf32>
    %64 = vector.extract_strided_slice %42 {offsets = [0, 3], sizes = [32, 1], strides = [1, 1]} : vector<32x9xf32> to vector<32x1xf32>
    %65 = vector.broadcast %64 : vector<32x1xf32> to vector<32x256xf32>
    %66 = arith.mulf %63, %65 : vector<32x256xf32>
    %67 = vector.broadcast %37 : vector<1x256xf32> to vector<32x256xf32>
    %68 = arith.mulf %66, %67 : vector<32x256xf32>
    %69 = arith.addf %62, %68 : vector<32x256xf32>
    %c0_26 = arith.constant 0 : index
    %c128_27 = arith.constant 128 : index
    %70 = vector.load %arg12[%c0_26, %c128_27] : memref<32x512xf32, #tpu.memory_space<vmem>>, vector<32x256xf32>
    %71 = vector.extract_strided_slice %42 {offsets = [0, 4], sizes = [32, 1], strides = [1, 1]} : vector<32x9xf32> to vector<32x1xf32>
    %72 = vector.broadcast %71 : vector<32x1xf32> to vector<32x256xf32>
    %73 = arith.mulf %70, %72 : vector<32x256xf32>
    %74 = arith.addf %69, %73 : vector<32x256xf32>
    %c0_28 = arith.constant 0 : index
    %c129 = arith.constant 129 : index
    %75 = vector.load %arg12[%c0_28, %c129] : memref<32x512xf32, #tpu.memory_space<vmem>>, vector<32x256xf32>
    %76 = vector.extract_strided_slice %42 {offsets = [0, 5], sizes = [32, 1], strides = [1, 1]} : vector<32x9xf32> to vector<32x1xf32>
    %77 = vector.broadcast %76 : vector<32x1xf32> to vector<32x256xf32>
    %78 = arith.mulf %75, %77 : vector<32x256xf32>
    %79 = vector.broadcast %41 : vector<1x256xf32> to vector<32x256xf32>
    %80 = arith.mulf %78, %79 : vector<32x256xf32>
    %81 = arith.addf %74, %80 : vector<32x256xf32>
    %c0_29 = arith.constant 0 : index
    %c143 = arith.constant 143 : index
    %82 = vector.load %arg12[%c0_29, %c143] : memref<32x512xf32, #tpu.memory_space<vmem>>, vector<32x256xf32>
    %83 = vector.extract_strided_slice %42 {offsets = [0, 6], sizes = [32, 1], strides = [1, 1]} : vector<32x9xf32> to vector<32x1xf32>
    %84 = vector.broadcast %83 : vector<32x1xf32> to vector<32x256xf32>
    %85 = arith.mulf %82, %84 : vector<32x256xf32>
    %86 = vector.broadcast %37 : vector<1x256xf32> to vector<32x256xf32>
    %87 = arith.mulf %85, %86 : vector<32x256xf32>
    %88 = arith.addf %81, %87 : vector<32x256xf32>
    %c0_30 = arith.constant 0 : index
    %c144 = arith.constant 144 : index
    %89 = vector.load %arg12[%c0_30, %c144] : memref<32x512xf32, #tpu.memory_space<vmem>>, vector<32x256xf32>
    %90 = vector.extract_strided_slice %42 {offsets = [0, 7], sizes = [32, 1], strides = [1, 1]} : vector<32x9xf32> to vector<32x1xf32>
    %91 = vector.broadcast %90 : vector<32x1xf32> to vector<32x256xf32>
    %92 = arith.mulf %89, %91 : vector<32x256xf32>
    %93 = arith.addf %88, %92 : vector<32x256xf32>
    %c0_31 = arith.constant 0 : index
    %c145 = arith.constant 145 : index
    %94 = vector.load %arg12[%c0_31, %c145] : memref<32x512xf32, #tpu.memory_space<vmem>>, vector<32x256xf32>
    %95 = vector.extract_strided_slice %42 {offsets = [0, 8], sizes = [32, 1], strides = [1, 1]} : vector<32x9xf32> to vector<32x1xf32>
    %96 = vector.broadcast %95 : vector<32x1xf32> to vector<32x256xf32>
    %97 = arith.mulf %94, %96 : vector<32x256xf32>
    %98 = vector.broadcast %41 : vector<1x256xf32> to vector<32x256xf32>
    %99 = arith.mulf %97, %98 : vector<32x256xf32>
    %100 = arith.addf %93, %99 : vector<32x256xf32>
    %c0_32 = arith.constant 0 : index
    %c0_33 = arith.constant 0 : index
    %101 = vector.load %arg6[%c0_32, %c0_33] : memref<32x1xf32, #tpu.memory_space<vmem>>, vector<32x1xf32>
    %102 = vector.broadcast %101 : vector<32x1xf32> to vector<32x256xf32>
    %103 = arith.mulf %100, %102 : vector<32x256xf32>
    %c0_34 = arith.constant 0 : index
    %c0_35 = arith.constant 0 : index
    %104 = vector.load %arg7[%c0_34, %c0_35] : memref<32x1xf32, #tpu.memory_space<vmem>>, vector<32x1xf32>
    %105 = vector.broadcast %104 : vector<32x1xf32> to vector<32x256xf32>
    %106 = arith.addf %103, %105 : vector<32x256xf32>
    %cst_36 = arith.constant 0.000000e+00 : f32
    %107 = vector.broadcast %cst_36 : f32 to vector<32x256xf32>
    %108 = arith.maximumf %106, %107 : vector<32x256xf32>
    %c0_37 = arith.constant 0 : index
    %c0_38 = arith.constant 0 : index
    %109 = vector.load %arg8[%c0_37, %c0_38] : memref<8x32xf32, #tpu.memory_space<vmem>>, vector<8x32xf32>
    %cst_39 = arith.constant dense<0.000000e+00> : vector<8x256xf32>
    %110 = tpu.matmul %109, %108, %cst_39 {dimension_numbers = #tpu.dot_dimension_numbers<[1], [0], [0], [1], [0, 0, 1, 1], [], []>} : vector<8x32xf32>, vector<32x256xf32>, vector<8x256xf32> -> vector<8x256xf32>
    %c0_40 = arith.constant 0 : index
    %c0_41 = arith.constant 0 : index
    %111 = vector.load %arg9[%c0_40, %c0_41] : memref<8x1xf32, #tpu.memory_space<vmem>>, vector<8x1xf32>
    %112 = vector.broadcast %111 : vector<8x1xf32> to vector<8x256xf32>
    %113 = arith.mulf %110, %112 : vector<8x256xf32>
    %c0_42 = arith.constant 0 : index
    %c0_43 = arith.constant 0 : index
    %114 = vector.load %arg10[%c0_42, %c0_43] : memref<8x1xf32, #tpu.memory_space<vmem>>, vector<8x1xf32>
    %115 = vector.broadcast %114 : vector<8x1xf32> to vector<8x256xf32>
    %116 = arith.addf %113, %115 : vector<8x256xf32>
    %117 = arith.addf %116, %1 : vector<8x256xf32>
    %c0_44 = arith.constant 0 : index
    %c0_45 = arith.constant 0 : index
    %c0_46 = arith.constant 0 : index
    %118 = vector.load %arg11[%c0_44, %c0_45, %c0_46] : memref<1x8x256xf32, #tpu.memory_space<vmem>>, vector<1x8x256xf32>
    %119 = vector.shape_cast %118 : vector<1x8x256xf32> to vector<8x256xf32>
    %120 = vector.shape_cast %117 : vector<8x256xf32> to vector<1x8x256xf32>
    tpu.vector_store %arg11[%c0_44, %c0_45, %c0_46], %120 {strides = array<i32>} : memref<1x8x256xf32, #tpu.memory_space<vmem>>, vector<1x8x256xf32>,
    return
  }
  func.func @transform_0(%arg0: i32) -> (i32, i32, i32) {
    %c0_i32 = arith.constant 0 : i32
    %c0_i32_0 = arith.constant 0 : i32
    %c0_i32_1 = arith.constant 0 : i32
    return %arg0, %c0_i32, %c0_i32_0 : i32, i32, i32
  }
  func.func @transform_1(%arg0: i32) -> (i32, i32) {
    %c0_i32 = arith.constant 0 : i32
    %c0_i32_0 = arith.constant 0 : i32
    %c0_i32_1 = arith.constant 0 : i32
    return %c0_i32, %c0_i32_0 : i32, i32
  }
  func.func @transform_2(%arg0: i32) -> (i32, i32) {
    %c0_i32 = arith.constant 0 : i32
    %c0_i32_0 = arith.constant 0 : i32
    %c0_i32_1 = arith.constant 0 : i32
    return %c0_i32, %c0_i32_0 : i32, i32
  }
  func.func @transform_3(%arg0: i32) -> (i32, i32) {
    %c0_i32 = arith.constant 0 : i32
    %c0_i32_0 = arith.constant 0 : i32
    %c0_i32_1 = arith.constant 0 : i32
    return %c0_i32, %c0_i32_0 : i32, i32
  }
  func.func @transform_4(%arg0: i32) -> (i32, i32) {
    %c0_i32 = arith.constant 0 : i32
    %c0_i32_0 = arith.constant 0 : i32
    %c0_i32_1 = arith.constant 0 : i32
    return %c0_i32, %c0_i32_0 : i32, i32
  }
  func.func @transform_5(%arg0: i32) -> (i32, i32) {
    %c0_i32 = arith.constant 0 : i32
    %c0_i32_0 = arith.constant 0 : i32
    %c0_i32_1 = arith.constant 0 : i32
    return %c0_i32, %c0_i32_0 : i32, i32
  }
  func.func @transform_6(%arg0: i32) -> (i32, i32) {
    %c0_i32 = arith.constant 0 : i32
    %c0_i32_0 = arith.constant 0 : i32
    %c0_i32_1 = arith.constant 0 : i32
    return %c0_i32, %c0_i32_0 : i32, i32
  }
  func.func @transform_7(%arg0: i32) -> (i32, i32) {
    %c0_i32 = arith.constant 0 : i32
    %c0_i32_0 = arith.constant 0 : i32
    %c0_i32_1 = arith.constant 0 : i32
    return %c0_i32, %c0_i32_0 : i32, i32
  }
  func.func @transform_8(%arg0: i32) -> (i32, i32) {
    %c0_i32 = arith.constant 0 : i32
    %c0_i32_0 = arith.constant 0 : i32
    %c0_i32_1 = arith.constant 0 : i32
    return %c0_i32, %c0_i32_0 : i32, i32
  }
  func.func @transform_9(%arg0: i32) -> (i32, i32) {
    %c0_i32 = arith.constant 0 : i32
    %c0_i32_0 = arith.constant 0 : i32
    %c0_i32_1 = arith.constant 0 : i32
    return %c0_i32, %c0_i32_0 : i32, i32
  }
  func.func @transform_10(%arg0: i32) -> (i32, i32, i32) {
    %c0_i32 = arith.constant 0 : i32
    %c0_i32_0 = arith.constant 0 : i32
    %c0_i32_1 = arith.constant 0 : i32
    return %arg0, %c0_i32, %c0_i32_0 : i32, i32, i32
  }
}

</mosaic_0001>

<llo_original>
// kernel: tpu_custom_call.1
$region0: #{tpu_custom_call.1}
  #allocation0 [shape = 'u32[]', space=smem, size = 0x4, offset = 0x4, fixed_abs, tag = 'smem constant byte address 0x4 - core index']
  #allocation1 [shape = 'u32[72,128]{1,0:T(1,128)}', space=vmem, size = 0x9000, scoped, tag = 'internal scratch']
  #allocation2 [shape = 'f32[32,512]{1,0:T(8,128)}', space=vmem, size = 0x10000, scoped, tag = 'scratch operand']
  %s0 = inlined_call_operand.vmem [shape: f32[2,8,256], index: 0, kind: input, shape index: {}]
  %s1 = inlined_call_operand.vmem [shape: f32[32,8], index: 1, kind: input, shape index: {}]
  %s2 = inlined_call_operand.vmem [shape: f32[32,1], index: 2, kind: input, shape index: {}]
  %s3 = inlined_call_operand.vmem [shape: f32[32,1], index: 3, kind: input, shape index: {}]
  %s4 = inlined_call_operand.vmem [shape: f32[32,9], index: 4, kind: input, shape index: {}]
  %s5 = inlined_call_operand.vmem [shape: f32[32,1], index: 5, kind: input, shape index: {}]
  %s6 = inlined_call_operand.vmem [shape: f32[32,1], index: 6, kind: input, shape index: {}]
  %s7 = inlined_call_operand.vmem [shape: f32[8,32], index: 7, kind: input, shape index: {}]
  %s8 = inlined_call_operand.vmem [shape: f32[8,1], index: 8, kind: input, shape index: {}]
  %s9 = inlined_call_operand.vmem [shape: f32[8,1], index: 9, kind: input, shape index: {}]
  %s10 = inlined_call_operand.hbm [shape: f32[2,8,256], index: 10, kind: output, shape index: {}]
  %s11 = sld [smem:[#allocation0]]
  $region73: #{tpu_custom_call.1} parent=0
    _
  %s13 = ssub.s32 1, %s11
  %s14 = scalar_select 0, %s13, %s11
  $region1: #{tpu_custom_call.1} parent=0
    #allocation3 [shape = 'u8[16384]{0}', space=vmem, size = 0x4000, scoped, tag = 'output window, operand 0']
    #allocation4 [shape = 's32[2]{0}', space=sflag, size = 0x8, scoped, tag = 'scoped memory for tpu_custom_call.1']
    %15 = vsyncpa [#allocation4], 0
    %s16 = scalar_lea.sflag [#allocation4], 1
    %17 = vsyncpa %s16, 0
    loop: start=0, step=1, limit=4
    $region2: #{tpu_custom_call.1} parent=1 // loop_pre_header
      _
    $region3: #{tpu_custom_call.1} parent=1 // loop_header
      %s19 = sphi 0, %s23
      %p20 = scmp.ge.s32.totalorder %s19, 4
      %s29 = sphi 0, %s31
      %s32 = sphi 0, %s29
      %s33 = sphi 0, %s32
      %s49 = sphi 0, %s33
      %s53 = sphi 0, %s53
      %s55 = sphi 0, %s53
      %s56 = sphi 0, %s55
      %s70 = sphi 0, %s56
      %s74 = sphi 0, %s74
      %s76 = sphi 0, %s74
      %s77 = sphi 0, %s76
      %s91 = sphi 0, %s77
      %s95 = sphi 0, %s95
      %s97 = sphi 0, %s95
      %s98 = sphi 0, %s97
      %s112 = sphi 0, %s98
      %s116 = sphi 0, %s116
      %s118 = sphi 0, %s116
      %s119 = sphi 0, %s118
      %s133 = sphi 0, %s119
      %s137 = sphi 0, %s137
      %s139 = sphi 0, %s137
      %s140 = sphi 0, %s139
      %s154 = sphi 0, %s140
      %s158 = sphi 0, %s158
      %s160 = sphi 0, %s158
      %s161 = sphi 0, %s160
      %s175 = sphi 0, %s161
      %s179 = sphi 0, %s179
      %s181 = sphi 0, %s179
      %s182 = sphi 0, %s181
      %s196 = sphi 0, %s182
      %s200 = sphi 0, %s200
      %s202 = sphi 0, %s200
      %s203 = sphi 0, %s202
      %s217 = sphi 0, %s203
      %s221 = sphi 0, %s221
      %s223 = sphi 0, %s221
      %s224 = sphi 0, %s223
      %s238 = sphi 0, %s224
      %s244 = sphi 0, %s246
      %s247 = sphi 0, %s244
      %s248 = sphi 0, %s247
      %s264 = sphi 0, %s248
    $region4: #{tpu_custom_call.1} parent=1 // loop_header_branch
      %22 = sbr.rel (%p20) target = $region8
    $region5: #{tpu_custom_call.1} parent=1 // loop_body
      %s24 = ssub.s32 %s19, 1
      %s25 = ssub.s32 %s19, 2
      %s26 = sadd.s32 %s19, 1
      %s27 = ssub.s32 %s19, %s26
      %p28 = scmp.eq.s32.totalorder %s27, 0
      %s30 = sadd.s32 %s29, 1
      %s31 = scalar_select %p28, %s29, %s30
      %p34 = pneg %p28
      %p35 = scmp.eq.s32.totalorder %s19, 1
      %p36 = por %p34, %p35
      %p37 = scmp.ne.s32.totalorder %s29, %s32
      %p38 = scmp.eq.s32.totalorder %s19, 0
      %p39 = por %p37, %p38
      %p40 = scmp.ne.s32.totalorder %s29, %s32
      %p41 = scmp.eq.s32.totalorder %s24, 1
      %p42 = por %p40, %p41
      %p43 = scmp.ne.s32.totalorder %s32, %s33
      %p44 = scmp.eq.s32.totalorder %s24, 0
      %p45 = por %p43, %p44
      %p46 = scmp.ne.s32.totalorder %s32, %s33
      %p47 = scmp.eq.s32.totalorder %s25, 1
      %p48 = por %p46, %p47
      %p50 = scmp.ne.s32.totalorder %s33, %s49
      %p51 = scmp.eq.s32.totalorder %s25, 0
      %p52 = por %p50, %p51
      %s54 = sadd.s32 %s53, 1
      %p57 = scmp.eq.s32.totalorder %s19, 1
      %p58 = scmp.ne.s32.totalorder %s53, %s55
      %p59 = scmp.eq.s32.totalorder %s19, 0
      %p60 = por %p58, %p59
      %p61 = scmp.ne.s32.totalorder %s53, %s55
      %p62 = scmp.eq.s32.totalorder %s24, 1
      %p63 = por %p61, %p62
      %p64 = scmp.ne.s32.totalorder %s55, %s56
      %p65 = scmp.eq.s32.totalorder %s24, 0
      %p66 = por %p64, %p65
      %p67 = scmp.ne.s32.totalorder %s55, %s56
      %p68 = scmp.eq.s32.totalorder %s25, 1
      %p69 = por %p67, %p68
      %p71 = scmp.ne.s32.totalorder %s56, %s70
      %p72 = scmp.eq.s32.totalorder %s25, 0
      %p73 = por %p71, %p72
      %s75 = sadd.s32 %s74, 1
      %p78 = scmp.eq.s32.totalorder %s19, 1
      %p79 = scmp.ne.s32.totalorder %s74, %s76
      %p80 = scmp.eq.s32.totalorder %s19, 0
      %p81 = por %p79, %p80
      %p82 = scmp.ne.s32.totalorder %s74, %s76
      %p83 = scmp.eq.s32.totalorder %s24, 1
      %p84 = por %p82, %p83
      %p85 = scmp.ne.s32.totalorder %s76, %s77
      %p86 = scmp.eq.s32.totalorder %s24, 0
      %p87 = por %p85, %p86
      %p88 = scmp.ne.s32.totalorder %s76, %s77
      %p89 = scmp.eq.s32.totalorder %s25, 1
      %p90 = por %p88, %p89
      %p92 = scmp.ne.s32.totalorder %s77, %s91
      %p93 = scmp.eq.s32.totalorder %s25, 0
      %p94 = por %p92, %p93
      %s96 = sadd.s32 %s95, 1
      %p99 = scmp.eq.s32.totalorder %s19, 1
      %p100 = scmp.ne.s32.totalorder %s95, %s97
      %p101 = scmp.eq.s32.totalorder %s19, 0
      %p102 = por %p100, %p101
      %p103 = scmp.ne.s32.totalorder %s95, %s97
      %p104 = scmp.eq.s32.totalorder %s24, 1
      %p105 = por %p103, %p104
      %p106 = scmp.ne.s32.totalorder %s97, %s98
      %p107 = scmp.eq.s32.totalorder %s24, 0
      %p108 = por %p106, %p107
      %p109 = scmp.ne.s32.totalorder %s97, %s98
      %p110 = scmp.eq.s32.totalorder %s25, 1
      %p111 = por %p109, %p110
      %p113 = scmp.ne.s32.totalorder %s98, %s112
      %p114 = scmp.eq.s32.totalorder %s25, 0
      %p115 = por %p113, %p114
      %s117 = sadd.s32 %s116, 1
      %p120 = scmp.eq.s32.totalorder %s19, 1
      %p121 = scmp.ne.s32.totalorder %s116, %s118
      %p122 = scmp.eq.s32.totalorder %s19, 0
      %p123 = por %p121, %p122
      %p124 = scmp.ne.s32.totalorder %s116, %s118
      %p125 = scmp.eq.s32.totalorder %s24, 1
      %p126 = por %p124, %p125
      %p127 = scmp.ne.s32.totalorder %s118, %s119
      %p128 = scmp.eq.s32.totalorder %s24, 0
      %p129 = por %p127, %p128
      %p130 = scmp.ne.s32.totalorder %s118, %s119
      %p131 = scmp.eq.s32.totalorder %s25, 1
      %p132 = por %p130, %p131
      %p134 = scmp.ne.s32.totalorder %s119, %s133
      %p135 = scmp.eq.s32.totalorder %s25, 0
      %p136 = por %p134, %p135
      %s138 = sadd.s32 %s137, 1
      %p141 = scmp.eq.s32.totalorder %s19, 1
      %p142 = scmp.ne.s32.totalorder %s137, %s139
      %p143 = scmp.eq.s32.totalorder %s19, 0
      %p144 = por %p142, %p143
      %p145 = scmp.ne.s32.totalorder %s137, %s139
      %p146 = scmp.eq.s32.totalorder %s24, 1
      %p147 = por %p145, %p146
      %p148 = scmp.ne.s32.totalorder %s139, %s140
      %p149 = scmp.eq.s32.totalorder %s24, 0
      %p150 = por %p148, %p149
      %p151 = scmp.ne.s32.totalorder %s139, %s140
      %p152 = scmp.eq.s32.totalorder %s25, 1
      %p153 = por %p151, %p152
      %p155 = scmp.ne.s32.totalorder %s140, %s154
      %p156 = scmp.eq.s32.totalorder %s25, 0
      %p157 = por %p155, %p156
      %s159 = sadd.s32 %s158, 1
      %p162 = scmp.eq.s32.totalorder %s19, 1
      %p163 = scmp.ne.s32.totalorder %s158, %s160
      %p164 = scmp.eq.s32.totalorder %s19, 0
      %p165 = por %p163, %p164
      %p166 = scmp.ne.s32.totalorder %s158, %s160
      %p167 = scmp.eq.s32.totalorder %s24, 1
      %p168 = por %p166, %p167
      %p169 = scmp.ne.s32.totalorder %s160, %s161
      %p170 = scmp.eq.s32.totalorder %s24, 0
      %p171 = por %p169, %p170
      %p172 = scmp.ne.s32.totalorder %s160, %s161
      %p173 = scmp.eq.s32.totalorder %s25, 1
      %p174 = por %p172, %p173
      %p176 = scmp.ne.s32.totalorder %s161, %s175
      %p177 = scmp.eq.s32.totalorder %s25, 0
      %p178 = por %p176, %p177
      %s180 = sadd.s32 %s179, 1
      %p183 = scmp.eq.s32.totalorder %s19, 1
      %p184 = scmp.ne.s32.totalorder %s179, %s181
      %p185 = scmp.eq.s32.totalorder %s19, 0
      %p186 = por %p184, %p185
      %p187 = scmp.ne.s32.totalorder %s179, %s181
      %p188 = scmp.eq.s32.totalorder %s24, 1
      %p189 = por %p187, %p188
      %p190 = scmp.ne.s32.totalorder %s181, %s182
      %p191 = scmp.eq.s32.totalorder %s24, 0
      %p192 = por %p190, %p191
      %p193 = scmp.ne.s32.totalorder %s181, %s182
      %p194 = scmp.eq.s32.totalorder %s25, 1
      %p195 = por %p193, %p194
      %p197 = scmp.ne.s32.totalorder %s182, %s196
      %p198 = scmp.eq.s32.totalorder %s25, 0
      %p199 = por %p197, %p198
      %s201 = sadd.s32 %s200, 1
      %p204 = scmp.eq.s32.totalorder %s19, 1
      %p205 = scmp.ne.s32.totalorder %s200, %s202
      %p206 = scmp.eq.s32.totalorder %s19, 0
      %p207 = por %p205, %p206
      %p208 = scmp.ne.s32.totalorder %s200, %s202
      %p209 = scmp.eq.s32.totalorder %s24, 1
      %p210 = por %p208, %p209
      %p211 = scmp.ne.s32.totalorder %s202, %s203
      %p212 = scmp.eq.s32.totalorder %s24, 0
      %p213 = por %p211, %p212
      %p214 = scmp.ne.s32.totalorder %s202, %s203
      %p215 = scmp.eq.s32.totalorder %s25, 1
      %p216 = por %p214, %p215
      %p218 = scmp.ne.s32.totalorder %s203, %s217
      %p219 = scmp.eq.s32.totalorder %s25, 0
      %p220 = por %p218, %p219
      %s222 = sadd.s32 %s221, 1
      %p225 = scmp.eq.s32.totalorder %s19, 1
      %p226 = scmp.ne.s32.totalorder %s221, %s223
      %p227 = scmp.eq.s32.totalorder %s19, 0
      %p228 = por %p226, %p227
      %p229 = scmp.ne.s32.totalorder %s221, %s223
      %p230 = scmp.eq.s32.totalorder %s24, 1
      %p231 = por %p229, %p230
      %p232 = scmp.ne.s32.totalorder %s223, %s224
      %p233 = scmp.eq.s32.totalorder %s24, 0
      %p234 = por %p232, %p233
      %p235 = scmp.ne.s32.totalorder %s223, %s224
      %p236 = scmp.eq.s32.totalorder %s25, 1
      %p237 = por %p235, %p236
      %p239 = scmp.ne.s32.totalorder %s224, %s238
      %p240 = scmp.eq.s32.totalorder %s25, 0
      %p241 = por %p239, %p240
      %s242 = ssub.s32 %s19, %s26
      %p243 = scmp.eq.s32.totalorder %s242, 0
      %s245 = sadd.s32 %s244, 1
      %s246 = scalar_select %p243, %s244, %s245
      %p249 = pneg %p243
      %p250 = scmp.eq.s32.totalorder %s19, 1
      %p251 = por %p249, %p250
      %p252 = scmp.ne.s32.totalorder %s244, %s247
      %p253 = scmp.eq.s32.totalorder %s19, 0
      %p254 = por %p252, %p253
      %p255 = scmp.ne.s32.totalorder %s244, %s247
      %p256 = scmp.eq.s32.totalorder %s24, 1
      %p257 = por %p255, %p256
      %p258 = scmp.ne.s32.totalorder %s247, %s248
      %p259 = scmp.eq.s32.totalorder %s24, 0
      %p260 = por %p258, %p259
      %p261 = scmp.ne.s32.totalorder %s247, %s248
      %p262 = scmp.eq.s32.totalorder %s25, 1
      %p263 = por %p261, %p262
      %p265 = scmp.ne.s32.totalorder %s248, %s264
      %p266 = scmp.eq.s32.totalorder %s25, 0
      %p267 = por %p265, %p266
      %p268 = scmp.le.s32.totalorder 1, %s19
      %p269 = scmp.lt.s32.totalorder %s19, 3
      %p270 = pnand %p268, %p269
      %p271 = pneg %p270
      // Predicated region
      $region9: #{tpu_custom_call.1} parent=5 // pred_check
        _
      $region10: #{tpu_custom_call.1} parent=5 // pred_check_branch
        %273 = sbr.rel (%p270) target = $region12
      $region11: #{tpu_custom_call.1} parent=5 // pred_region
        %s274 = ssub.s32 %s19, 1
        // Predicated region
        $region13: #{tpu_custom_call.1} parent=11 // pred_check
          %p275 = pneg %p66
        $region14: #{tpu_custom_call.1} parent=11 // pred_check_branch
          %277 = sbr.rel (%p275) target = $region16
        $region15: #{tpu_custom_call.1} parent=11 // pred_region
          _
        $region16: #{tpu_custom_call.1} parent=11 // pred_fallthru
          _
        // Predicated region
        $region17: #{tpu_custom_call.1} parent=11 // pred_check
          %p278 = pneg %p87
        $region18: #{tpu_custom_call.1} parent=11 // pred_check_branch
          %280 = sbr.rel (%p278) target = $region20
        $region19: #{tpu_custom_call.1} parent=11 // pred_region
          _
        $region20: #{tpu_custom_call.1} parent=11 // pred_fallthru
          _
        // Predicated region
        $region21: #{tpu_custom_call.1} parent=11 // pred_check
          %p281 = pneg %p108
        $region22: #{tpu_custom_call.1} parent=11 // pred_check_branch
          %283 = sbr.rel (%p281) target = $region24
        $region23: #{tpu_custom_call.1} parent=11 // pred_region
          _
        $region24: #{tpu_custom_call.1} parent=11 // pred_fallthru
          _
        // Predicated region
        $region25: #{tpu_custom_call.1} parent=11 // pred_check
          %p284 = pneg %p129
        $region26: #{tpu_custom_call.1} parent=11 // pred_check_branch
          %286 = sbr.rel (%p284) target = $region28
        $region27: #{tpu_custom_call.1} parent=11 // pred_region
          _
        $region28: #{tpu_custom_call.1} parent=11 // pred_fallthru
          _
        // Predicated region
        $region29: #{tpu_custom_call.1} parent=11 // pred_check
          %p287 = pneg %p150
        $region30: #{tpu_custom_call.1} parent=11 // pred_check_branch
          %289 = sbr.rel (%p287) target = $region32
        $region31: #{tpu_custom_call.1} parent=11 // pred_region
          _
        $region32: #{tpu_custom_call.1} parent=11 // pred_fallthru
          _
        // Predicated region
        $region33: #{tpu_custom_call.1} parent=11 // pred_check
          %p290 = pneg %p171
        $region34: #{tpu_custom_call.1} parent=11 // pred_check_branch
          %292 = sbr.rel (%p290) target = $region36
        $region35: #{tpu_custom_call.1} parent=11 // pred_region
          _
        $region36: #{tpu_custom_call.1} parent=11 // pred_fallthru
          _
        // Predicated region
        $region37: #{tpu_custom_call.1} parent=11 // pred_check
          %p293 = pneg %p192
        $region38: #{tpu_custom_call.1} parent=11 // pred_check_branch
          %295 = sbr.rel (%p293) target = $region40
        $region39: #{tpu_custom_call.1} parent=11 // pred_region
          _
        $region40: #{tpu_custom_call.1} parent=11 // pred_fallthru
          _
        // Predicated region
        $region41: #{tpu_custom_call.1} parent=11 // pred_check
          %p296 = pneg %p213
        $region42: #{tpu_custom_call.1} parent=11 // pred_check_branch
          %298 = sbr.rel (%p296) target = $region44
        $region43: #{tpu_custom_call.1} parent=11 // pred_region
          _
        $region44: #{tpu_custom_call.1} parent=11 // pred_fallthru
          _
        // Predicated region
        $region45: #{tpu_custom_call.1} parent=11 // pred_check
          %p299 = pneg %p234
        $region46: #{tpu_custom_call.1} parent=11 // pred_check_branch
          %301 = sbr.rel (%p299) target = $region48
        $region47: #{tpu_custom_call.1} parent=11 // pred_region
          _
        $region48: #{tpu_custom_call.1} parent=11 // pred_fallthru
          _
      $region12: #{tpu_custom_call.1} parent=5 // pred_fallthru
        _
      %p302 = scmp.lt.s32.totalorder %s19, 2
      // Predicated region
      $region49: #{tpu_custom_call.1} parent=5 // pred_check
        %p303 = pneg %p302
      $region50: #{tpu_custom_call.1} parent=5 // pred_check_branch
        %305 = sbr.rel (%p303) target = $region52
      $region51: #{tpu_custom_call.1} parent=5 // pred_region
        // Predicated region
        $region53: #{tpu_custom_call.1} parent=51 // pred_check
          %p306 = pneg %p39
        $region54: #{tpu_custom_call.1} parent=51 // pred_check_branch
          %308 = sbr.rel (%p306) target = $region56
        $region55: #{tpu_custom_call.1} parent=51 // pred_region
          %p309 = scmp.lt.s32.totalorder %s19, 1
          %s310 = scalar_select %p309, %s19, 1
          %s311 = smul.addr %s310, 2
          %s312 = smul.addr %s311, 8
          %s313 = scalar_lea.vmem %s0, %s312
        $region56: #{tpu_custom_call.1} parent=51 // pred_fallthru
          _
      $region52: #{tpu_custom_call.1} parent=5 // pred_fallthru
        _
      %p314 = scmp.le.s32.totalorder 1, %s19
      %p315 = scmp.lt.s32.totalorder %s19, 3
      %p316 = pnand %p314, %p315
      %p317 = pneg %p316
      // Predicated region
      $region57: #{tpu_custom_call.1} parent=5 // pred_check
        _
      $region58: #{tpu_custom_call.1} parent=5 // pred_check_branch
        %319 = sbr.rel (%p316) target = $region60
      $region59: #{tpu_custom_call.1} parent=5 // pred_region
        %s320 = ssub.s32 %s19, 1
        %p321 = scmp.lt.s32.totalorder %s24, 1
        %s322 = scalar_select %p321, %s24, 1
        %s323 = smul.addr %s322, 2
        %s324 = smul.addr %s323, 8
        %s325 = scalar_lea.vmem %s0, %s324
        %p326 = pneg %p45
        %p327 = pneg %p42
        %p328 = pneg %p66
        %p329 = pneg %p63
        %p330 = pneg %p87
        %p331 = pneg %p84
        %p332 = pneg %p108
        %p333 = pneg %p105
        %p334 = pneg %p129
        %p335 = pneg %p126
        %p336 = pneg %p150
        %p337 = pneg %p147
        %p338 = pneg %p171
        %p339 = pneg %p168
        %p340 = pneg %p192
        %p341 = pneg %p189
        %p342 = pneg %p213
        %p343 = pneg %p210
        %p344 = pneg %p234
        %p345 = pneg %p231
        %p346 = pneg %p260
        %p347 = pneg %p257
        %s348 = sand.u32 %s247, 1
        %s349 = scalar_lea.sflag [#allocation4], %s348
        %s350 = sand.u32 %s247, 1
        %s351 = smul.addr %s350, 16
        %s352 = scalar_lea.vmem [#allocation3], %s351
        %p353 = scmp.lt.s32.totalorder %s24, 1
        %s354 = scalar_select %p353, %s24, 1
        %s355 = smul.addr %s354, 2
        %s356 = smul.addr %s355, 8
        %s357 = scalar_lea.vmem %s0, %s356
        %v358 = vld [vmem:[%s357] sm:$0xff]
        %v359 = vld [vmem:[%s357 + $0x8] sm:$0xff]
        %v360 = vld [vmem:[%s1] sm:$0xff]
        %v361 = vld [vmem:[%s1 + $0x8] sm:$0xff]
        %v362 = vld [vmem:[%s1 + $0x10] sm:$0xff]
        %v363 = vld [vmem:[%s1 + $0x18] sm:$0xff]
        %vm364 = vcmask 64512
        %v366 = vsel %vm364, %v360, 0
        %v369 = vsel %vm364, %v361, 0
        %v372 = vsel %vm364, %v362, 0
        %v375 = vsel %vm364, %v363, 0
        %377 = vmatpush.msra.mxu0 0.0
        %378 = vmatpush.msra.mxu0 0.0
        %379 = vmatpush.msra.mxu0 0.0
        %380 = vmatpush.msra.mxu0 0.0
        %381 = vmatpush.msra.mxu0 0.0
        %382 = vmatpush.msra.mxu0 0.0
        %383 = vmatpush.msra.mxu0 0.0
        %384 = vmatpush.msra.mxu0 0.0
        %385 = vmatpush.msra.mxu0 0.0
        %386 = vmatpush.msra.mxu0 0.0
        %387 = vmatpush.msra.mxu0 0.0
        %388 = vmatpush.msra.mxu0 0.0
        %389 = vmatpush.msra.mxu0 0.0
        %390 = vmatpush.msra.mxu0 0.0
        %391 = vmatpush.msra.mxu0 0.0
        %392 = vmatpush.msra.mxu0 %v358
        %393 = vmatmul.f32.gmra.mxu0 %v366
        %v394 = vpop.f32.mrf.mxu0
        %v395 = vadd.f32 0.0, %v394
        %396 = vmatmul.f32.gmra.mxu0 %v369
        %v397 = vpop.f32.mrf.mxu0
        %v398 = vadd.f32 0.0, %v397
        %399 = vmatmul.f32.gmra.mxu0 %v372
        %v400 = vpop.f32.mrf.mxu0
        %v401 = vadd.f32 0.0, %v400
        %402 = vmatmul.f32.gmra.mxu0 %v375
        %v403 = vpop.f32.mrf.mxu0
        %v404 = vadd.f32 0.0, %v403
        %405 = vdwg.mxu0
        %406 = vmatpush.msra.mxu0 0.0
        %407 = vmatpush.msra.mxu0 0.0
        %408 = vmatpush.msra.mxu0 0.0
        %409 = vmatpush.msra.mxu0 0.0
        %410 = vmatpush.msra.mxu0 0.0
        %411 = vmatpush.msra.mxu0 0.0
        %412 = vmatpush.msra.mxu0 0.0
        %413 = vmatpush.msra.mxu0 0.0
        %414 = vmatpush.msra.mxu0 0.0
        %415 = vmatpush.msra.mxu0 0.0
        %416 = vmatpush.msra.mxu0 0.0
        %417 = vmatpush.msra.mxu0 0.0
        %418 = vmatpush.msra.mxu0 0.0
        %419 = vmatpush.msra.mxu0 0.0
        %420 = vmatpush.msra.mxu0 0.0
        %421 = vmatpush.msra.mxu0 %v359
        %422 = vmatmul.f32.gmra.mxu0 %v366
        %v423 = vpop.f32.mrf.mxu0
        %v424 = vadd.f32 0.0, %v423
        %425 = vmatmul.f32.gmra.mxu0 %v369
        %v426 = vpop.f32.mrf.mxu0
        %v427 = vadd.f32 0.0, %v426
        %428 = vmatmul.f32.gmra.mxu0 %v372
        %v429 = vpop.f32.mrf.mxu0
        %v430 = vadd.f32 0.0, %v429
        %431 = vmatmul.f32.gmra.mxu0 %v375
        %v432 = vpop.f32.mrf.mxu0
        %v433 = vadd.f32 0.0, %v432
        %434 = vdwg.mxu0
        %v435 = vld [vmem:[%s2] sm:$0xff]
        %v436 = vld [vmem:[%s2 + $0x8] sm:$0xff]
        %v437 = vld [vmem:[%s2 + $0x10] sm:$0xff]
        %v438 = vld [vmem:[%s2 + $0x18] sm:$0xff]
        %440 = vset.pattern.permute.xlu0 0
        %441 = vperm.xlu0 %440, %v435
        %v442 = vpop.permute.xlu0 %441
        %445 = vset.pattern.permute.xlu0 0
        %446 = vperm.xlu0 %445, %v436
        %v447 = vpop.permute.xlu0 %446
        %450 = vset.pattern.permute.xlu0 0
        %451 = vperm.xlu0 %450, %v437
        %v452 = vpop.permute.xlu0 %451
        %455 = vset.pattern.permute.xlu0 0
        %456 = vperm.xlu0 %455, %v438
        %v457 = vpop.permute.xlu0 %456
        %v459 = vmul.f32 %v395, %v442
        %v460 = vmul.f32 %v424, %v442
        %v461 = vmul.f32 %v398, %v447
        %v462 = vmul.f32 %v427, %v447
        %v463 = vmul.f32 %v401, %v452
        %v464 = vmul.f32 %v430, %v452
        %v465 = vmul.f32 %v404, %v457
        %v466 = vmul.f32 %v433, %v457
        %v467 = vld [vmem:[%s3] sm:$0xff]
        %v468 = vld [vmem:[%s3 + $0x8] sm:$0xff]
        %v469 = vld [vmem:[%s3 + $0x10] sm:$0xff]
        %v470 = vld [vmem:[%s3 + $0x18] sm:$0xff]
        %472 = vset.pattern.permute.xlu0 0
        %473 = vperm.xlu0 %472, %v467
        %v474 = vpop.permute.xlu0 %473
        %477 = vset.pattern.permute.xlu0 0
        %478 = vperm.xlu0 %477, %v468
        %v479 = vpop.permute.xlu0 %478
        %482 = vset.pattern.permute.xlu0 0
        %483 = vperm.xlu0 %482, %v469
        %v484 = vpop.permute.xlu0 %483
        %487 = vset.pattern.permute.xlu0 0
        %488 = vperm.xlu0 %487, %v470
        %v489 = vpop.permute.xlu0 %488
        %v491 = vadd.f32 %v459, %v474
        %v492 = vadd.f32 %v460, %v474
        %v493 = vadd.f32 %v461, %v479
        %v494 = vadd.f32 %v462, %v479
        %v495 = vadd.f32 %v463, %v484
        %v496 = vadd.f32 %v464, %v484
        %v497 = vadd.f32 %v465, %v489
        %v498 = vadd.f32 %v466, %v489
        %v499 = vmax.f32 %v491, 0.0
        %v500 = vmax.f32 %v492, 0.0
        %v501 = vmax.f32 %v493, 0.0
        %v502 = vmax.f32 %v494, 0.0
        %v503 = vmax.f32 %v495, 0.0
        %v504 = vmax.f32 %v496, 0.0
        %v505 = vmax.f32 %v497, 0.0
        %v506 = vmax.f32 %v498, 0.0
        %507 = vst [vmem:[#allocation2] sm:$0xff] 0.0
        %508 = vst [vmem:[#allocation2 + $0x20] sm:$0xff] 0.0
        %509 = vst [vmem:[#allocation2 + $0x40] sm:$0xff] 0.0
        %510 = vst [vmem:[#allocation2 + $0x60] sm:$0xff] 0.0
        %511 = vst [vmem:[#allocation2 + $0x18] sm:$0xff] 0.0
        %512 = vst [vmem:[#allocation2 + $0x38] sm:$0xff] 0.0
        %513 = vst [vmem:[#allocation2 + $0x58] sm:$0xff] 0.0
        %514 = vst [vmem:[#allocation2 + $0x78] sm:$0xff] 0.0
        %515 = vst [vmem:[#allocation2 + $0x8] sm:$0xff] %v499
        %516 = vst [vmem:[#allocation2 + $0x10] sm:$0xff] %v500
        %517 = vst [vmem:[#allocation2 + $0x28] sm:$0xff] %v501
        %518 = vst [vmem:[#allocation2 + $0x30] sm:$0xff] %v502
        %519 = vst [vmem:[#allocation2 + $0x48] sm:$0xff] %v503
        %520 = vst [vmem:[#allocation2 + $0x50] sm:$0xff] %v504
        %521 = vst [vmem:[#allocation2 + $0x68] sm:$0xff] %v505
        %522 = vst [vmem:[#allocation2 + $0x70] sm:$0xff] %v506
        %v523 = vlaneseq
        %v524 = vand.u32 %v523, 127
        %v525 = vadd.s32 %v524, 128
        %vm526 = vcmp.lt.s32.totalorder %v524, 0
        %v527 = vsub.s32 0, %v524
        %v528 = vsel %vm526, %v527, %v524
        %v529 = vshrl.u32 %v528, 4
        %v530 = vand.u32 %v528, 15
        %v531 = vsub.s32 0, %v530
        %v532 = vsel %vm526, %v531, %v530
        %vm533 = vcmp.lt.s32.totalorder %v525, 0
        %v534 = vsub.s32 0, %v525
        %v535 = vsel %vm533, %v534, %v525
        %v536 = vshrl.u32 %v535, 4
        %v537 = vand.u32 %v535, 15
        %v538 = vsub.s32 0, %v537
        %v539 = vsel %vm533, %v538, %v537
        %vm540 = vcmp.ne.s32.totalorder %v532, 0
        %vm541 = vcmp.ne.s32.totalorder %v539, 0
        %vm542 = vcmp.lt.s32.totalorder %v532, 0
        %vm543 = vcmp.lt.s32.totalorder %v539, 0
        %vm544 = vmand %vm542, %vm540
        %vm545 = vmand %vm543, %vm541
        %v546 = vadd.s32 %v532, 16
        %v547 = vadd.s32 %v539, 16
        %v548 = vsel %vm544, %v546, %v532
        %v549 = vsel %vm545, %v547, %v539
        %vm550 = vcmp.ne.s32.totalorder %v548, 0
        %vm551 = vcmp.ne.s32.totalorder %v549, 0
        %v552 = vsel %vm550, 1, 0
        %v553 = vsel %vm551, 1, 0
        %v554 = vcvt.s32.f32 %v552
        %v555 = vcvt.s32.f32 %v553
        %vm556 = vcmp.ne.s32.totalorder %v548, 15
        %vm557 = vcmp.ne.s32.totalorder %v549, 15
        %v558 = vsel %vm556, 1, 0
        %v559 = vsel %vm557, 1, 0
        %v560 = vcvt.s32.f32 %v558
        %v561 = vcvt.s32.f32 %v559
        %v562 = vld [vmem:[%s4] sm:$0xff]
        %v563 = vld [vmem:[%s4 + $0x8] sm:$0xff]
        %v564 = vld [vmem:[%s4 + $0x10] sm:$0xff]
        %v565 = vld [vmem:[%s4 + $0x18] sm:$0xff]
        %v566 = vld [vmem:[#allocation2] sm:$0xff]
        %v567 = vld [vmem:[#allocation2 + $0x8] sm:$0xff]
        %v568 = vld [vmem:[#allocation2 + $0x10] sm:$0xff]
        %v569 = vld [vmem:[#allocation2 + $0x20] sm:$0xff]
        %v570 = vld [vmem:[#allocation2 + $0x28] sm:$0xff]
        %v571 = vld [vmem:[#allocation2 + $0x30] sm:$0xff]
        %v572 = vld [vmem:[#allocation2 + $0x40] sm:$0xff]
        %v573 = vld [vmem:[#allocation2 + $0x48] sm:$0xff]
        %v574 = vld [vmem:[#allocation2 + $0x50] sm:$0xff]
        %v575 = vld [vmem:[#allocation2 + $0x60] sm:$0xff]
        %v576 = vld [vmem:[#allocation2 + $0x68] sm:$0xff]
        %v577 = vld [vmem:[#allocation2 + $0x70] sm:$0xff]
        %579 = vset.pattern.permute.xlu0 0
        %580 = vperm.xlu0 %579, %v562
        %v581 = vpop.permute.xlu0 %580
        %584 = vset.pattern.permute.xlu0 0
        %585 = vperm.xlu0 %584, %v563
        %v586 = vpop.permute.xlu0 %585
        %589 = vset.pattern.permute.xlu0 0
        %590 = vperm.xlu0 %589, %v564
        %v591 = vpop.permute.xlu0 %590
        %594 = vset.pattern.permute.xlu0 0
        %595 = vperm.xlu0 %594, %v565
        %v596 = vpop.permute.xlu0 %595
        %v598 = vmul.f32 %v566, %v581
        %v599 = vmul.f32 %v567, %v581
        %v600 = vmul.f32 %v568, %v581
        %v601 = vmul.f32 %v569, %v586
        %v602 = vmul.f32 %v570, %v586
        %v603 = vmul.f32 %v571, %v586
        %v604 = vmul.f32 %v572, %v591
        %v605 = vmul.f32 %v573, %v591
        %v606 = vmul.f32 %v574, %v591
        %v607 = vmul.f32 %v575, %v596
        %v608 = vmul.f32 %v576, %v596
        %v609 = vmul.f32 %v577, %v596
        %612 = vrot.lane.b32.xlu0 %v554, 111
        %v613 = vpop.permute.xlu0 %612
        %614 = vrot.lane.b32.xlu0 %v555, 111
        %v615 = vpop.permute.xlu0 %614
        %vm616 = vcmask 908288
        %v617 = vsel %vm616, %v613, %v615
        %v621 = vmul.f32 %v598, %v613
        %v622 = vmul.f32 %v599, %v617
        %v623 = vmul.f32 %v600, %v615
        %v624 = vmul.f32 %v601, %v613
        %v625 = vmul.f32 %v602, %v617
        %v626 = vmul.f32 %v603, %v615
        %v627 = vmul.f32 %v604, %v613
        %v628 = vmul.f32 %v605, %v617
        %v629 = vmul.f32 %v606, %v615
        %v630 = vmul.f32 %v607, %v613
        %v631 = vmul.f32 %v608, %v617
        %v632 = vmul.f32 %v609, %v615
        %v633 = vadd.f32 %v621, 0.0
        %v634 = vadd.f32 %v622, 0.0
        %v635 = vadd.f32 %v623, 0.0
        %v636 = vadd.f32 %v624, 0.0
        %v637 = vadd.f32 %v625, 0.0
        %v638 = vadd.f32 %v626, 0.0
        %v639 = vadd.f32 %v627, 0.0
        %v640 = vadd.f32 %v628, 0.0
        %v641 = vadd.f32 %v629, 0.0
        %v642 = vadd.f32 %v630, 0.0
        %v643 = vadd.f32 %v631, 0.0
        %v644 = vadd.f32 %v632, 0.0
        %645 = vset.pattern.permute.xlu0 1
        %646 = vperm.xlu0 %645, %v562
        %v647 = vpop.permute.xlu0 %646
        %649 = vset.pattern.permute.xlu0 1
        %650 = vperm.xlu0 %649, %v563
        %v651 = vpop.permute.xlu0 %650
        %653 = vset.pattern.permute.xlu0 1
        %654 = vperm.xlu0 %653, %v564
        %v655 = vpop.permute.xlu0 %654
        %657 = vset.pattern.permute.xlu0 1
        %658 = vperm.xlu0 %657, %v565
        %v659 = vpop.permute.xlu0 %658
        %v661 = vmul.f32 %v566, %v647
        %v662 = vmul.f32 %v567, %v647
        %v663 = vmul.f32 %v568, %v647
        %v664 = vmul.f32 %v569, %v651
        %v665 = vmul.f32 %v570, %v651
        %v666 = vmul.f32 %v571, %v651
        %v667 = vmul.f32 %v572, %v655
        %v668 = vmul.f32 %v573, %v655
        %v669 = vmul.f32 %v574, %v655
        %v670 = vmul.f32 %v575, %v659
        %v671 = vmul.f32 %v576, %v659
        %v672 = vmul.f32 %v577, %v659
        %685 = vrot.lane.b32.xlu0 %v661, 127
        %v686 = vpop.permute.xlu0 %685
        %687 = vrot.lane.b32.xlu0 %v662, 127
        %v688 = vpop.permute.xlu0 %687
        %689 = vrot.lane.b32.xlu0 %v663, 127
        %v690 = vpop.permute.xlu0 %689
        %691 = vrot.lane.b32.xlu0 %v664, 127
        %v692 = vpop.permute.xlu0 %691
        %693 = vrot.lane.b32.xlu0 %v665, 127
        %v694 = vpop.permute.xlu0 %693
        %695 = vrot.lane.b32.xlu0 %v666, 127
        %v696 = vpop.permute.xlu0 %695
        %697 = vrot.lane.b32.xlu0 %v667, 127
        %v698 = vpop.permute.xlu0 %697
        %699 = vrot.lane.b32.xlu0 %v668, 127
        %v700 = vpop.permute.xlu0 %699
        %701 = vrot.lane.b32.xlu0 %v669, 127
        %v702 = vpop.permute.xlu0 %701
        %703 = vrot.lane.b32.xlu0 %v670, 127
        %v704 = vpop.permute.xlu0 %703
        %705 = vrot.lane.b32.xlu0 %v671, 127
        %v706 = vpop.permute.xlu0 %705
        %707 = vrot.lane.b32.xlu0 %v672, 127
        %v708 = vpop.permute.xlu0 %707
        %vm709 = vcmask 1039360
        %v710 = vsel %vm709, %v686, %v688
        %v711 = vsel %vm709, %v688, %v690
        %v712 = vsel %vm709, %v692, %v694
        %v713 = vsel %vm709, %v694, %v696
        %v714 = vsel %vm709, %v698, %v700
        %v715 = vsel %vm709, %v700, %v702
        %v716 = vsel %vm709, %v704, %v706
        %v717 = vsel %vm709, %v706, %v708
        %v730 = vadd.f32 %v633, %v710
        %v731 = vadd.f32 %v634, %v711
        %v732 = vadd.f32 %v635, %v690
        %v733 = vadd.f32 %v636, %v712
        %v734 = vadd.f32 %v637, %v713
        %v735 = vadd.f32 %v638, %v696
        %v736 = vadd.f32 %v639, %v714
        %v737 = vadd.f32 %v640, %v715
        %v738 = vadd.f32 %v641, %v702
        %v739 = vadd.f32 %v642, %v716
        %v740 = vadd.f32 %v643, %v717
        %v741 = vadd.f32 %v644, %v708
        %742 = vset.pattern.permute.xlu0 2
        %743 = vperm.xlu0 %742, %v562
        %v744 = vpop.permute.xlu0 %743
        %746 = vset.pattern.permute.xlu0 2
        %747 = vperm.xlu0 %746, %v563
        %v748 = vpop.permute.xlu0 %747
        %750 = vset.pattern.permute.xlu0 2
        %751 = vperm.xlu0 %750, %v564
        %v752 = vpop.permute.xlu0 %751
        %754 = vset.pattern.permute.xlu0 2
        %755 = vperm.xlu0 %754, %v565
        %v756 = vpop.permute.xlu0 %755
        %v758 = vmul.f32 %v566, %v744
        %v759 = vmul.f32 %v567, %v744
        %v760 = vmul.f32 %v568, %v744
        %v761 = vmul.f32 %v569, %v748
        %v762 = vmul.f32 %v570, %v748
        %v763 = vmul.f32 %v571, %v748
        %v764 = vmul.f32 %v572, %v752
        %v765 = vmul.f32 %v573, %v752
        %v766 = vmul.f32 %v574, %v752
        %v767 = vmul.f32 %v575, %v756
        %v768 = vmul.f32 %v576, %v756
        %v769 = vmul.f32 %v577, %v756
        %772 = vrot.lane.b32.xlu0 %v560, 113
        %v773 = vpop.permute.xlu0 %772
        %774 = vrot.lane.b32.xlu0 %v561, 113
        %v775 = vpop.permute.xlu0 %774
        %vm776 = vcmask 924672
        %v777 = vsel %vm776, %v773, %v775
        %v781 = vmul.f32 %v758, %v773
        %v782 = vmul.f32 %v759, %v777
        %v783 = vmul.f32 %v760, %v775
        %v784 = vmul.f32 %v761, %v773
        %v785 = vmul.f32 %v762, %v777
        %v786 = vmul.f32 %v763, %v775
        %v787 = vmul.f32 %v764, %v773
        %v788 = vmul.f32 %v765, %v777
        %v789 = vmul.f32 %v766, %v775
        %v790 = vmul.f32 %v767, %v773
        %v791 = vmul.f32 %v768, %v777
        %v792 = vmul.f32 %v769, %v775
        %805 = vrot.lane.b32.xlu0 %v781, 126
        %v806 = vpop.permute.xlu0 %805
        %807 = vrot.lane.b32.xlu0 %v782, 126
        %v808 = vpop.permute.xlu0 %807
        %809 = vrot.lane.b32.xlu0 %v783, 126
        %v810 = vpop.permute.xlu0 %809
        %811 = vrot.lane.b32.xlu0 %v784, 126
        %v812 = vpop.permute.xlu0 %811
        %813 = vrot.lane.b32.xlu0 %v785, 126
        %v814 = vpop.permute.xlu0 %813
        %815 = vrot.lane.b32.xlu0 %v786, 126
        %v816 = vpop.permute.xlu0 %815
        %817 = vrot.lane.b32.xlu0 %v787, 126
        %v818 = vpop.permute.xlu0 %817
        %819 = vrot.lane.b32.xlu0 %v788, 126
        %v820 = vpop.permute.xlu0 %819
        %821 = vrot.lane.b32.xlu0 %v789, 126
        %v822 = vpop.permute.xlu0 %821
        %823 = vrot.lane.b32.xlu0 %v790, 126
        %v824 = vpop.permute.xlu0 %823
        %825 = vrot.lane.b32.xlu0 %v791, 126
        %v826 = vpop.permute.xlu0 %825
        %827 = vrot.lane.b32.xlu0 %v792, 126
        %v828 = vpop.permute.xlu0 %827
        %vm829 = vcmask 1031168
        %v830 = vsel %vm829, %v806, %v808
        %v831 = vsel %vm829, %v808, %v810
        %v832 = vsel %vm829, %v812, %v814
        %v833 = vsel %vm829, %v814, %v816
        %v834 = vsel %vm829, %v818, %v820
        %v835 = vsel %vm829, %v820, %v822
        %v836 = vsel %vm829, %v824, %v826
        %v837 = vsel %vm829, %v826, %v828
        %v850 = vadd.f32 %v730, %v830
        %v851 = vadd.f32 %v731, %v831
        %v852 = vadd.f32 %v732, %v810
        %v853 = vadd.f32 %v733, %v832
        %v854 = vadd.f32 %v734, %v833
        %v855 = vadd.f32 %v735, %v816
        %v856 = vadd.f32 %v736, %v834
        %v857 = vadd.f32 %v737, %v835
        %v858 = vadd.f32 %v738, %v822
        %v859 = vadd.f32 %v739, %v836
        %v860 = vadd.f32 %v740, %v837
        %v861 = vadd.f32 %v741, %v828
        %862 = vset.pattern.permute.xlu0 3
        %863 = vperm.xlu0 %862, %v562
        %v864 = vpop.permute.xlu0 %863
        %866 = vset.pattern.permute.xlu0 3
        %867 = vperm.xlu0 %866, %v563
        %v868 = vpop.permute.xlu0 %867
        %870 = vset.pattern.permute.xlu0 3
        %871 = vperm.xlu0 %870, %v564
        %v872 = vpop.permute.xlu0 %871
        %874 = vset.pattern.permute.xlu0 3
        %875 = vperm.xlu0 %874, %v565
        %v876 = vpop.permute.xlu0 %875
        %v878 = vmul.f32 %v566, %v864
        %v879 = vmul.f32 %v567, %v864
        %v880 = vmul.f32 %v568, %v864
        %v881 = vmul.f32 %v569, %v868
        %v882 = vmul.f32 %v570, %v868
        %v883 = vmul.f32 %v571, %v868
        %v884 = vmul.f32 %v572, %v872
        %v885 = vmul.f32 %v573, %v872
        %v886 = vmul.f32 %v574, %v872
        %v887 = vmul.f32 %v575, %v876
        %v888 = vmul.f32 %v576, %v876
        %v889 = vmul.f32 %v577, %v876
        %890 = vrot.lane.b32.xlu0 %v554, 127
        %v891 = vpop.permute.xlu0 %890
        %892 = vrot.lane.b32.xlu0 %v555, 127
        %v893 = vpop.permute.xlu0 %892
        %v894 = vsel %vm709, %v891, %v893
        %v898 = vmul.f32 %v878, %v891
        %v899 = vmul.f32 %v879, %v894
        %v900 = vmul.f32 %v880, %v893
        %v901 = vmul.f32 %v881, %v891
        %v902 = vmul.f32 %v882, %v894
        %v903 = vmul.f32 %v883, %v893
        %v904 = vmul.f32 %v884, %v891
        %v905 = vmul.f32 %v885, %v894
        %v906 = vmul.f32 %v886, %v893
        %v907 = vmul.f32 %v887, %v891
        %v908 = vmul.f32 %v888, %v894
        %v909 = vmul.f32 %v889, %v893
        %922 = vrot.lane.b32.xlu0 %v898, 112
        %v923 = vpop.permute.xlu0 %922
        %924 = vrot.lane.b32.xlu0 %v899, 112
        %v925 = vpop.permute.xlu0 %924
        %926 = vrot.lane.b32.xlu0 %v900, 112
        %v927 = vpop.permute.xlu0 %926
        %928 = vrot.lane.b32.xlu0 %v901, 112
        %v929 = vpop.permute.xlu0 %928
        %930 = vrot.lane.b32.xlu0 %v902, 112
        %v931 = vpop.permute.xlu0 %930
        %932 = vrot.lane.b32.xlu0 %v903, 112
        %v933 = vpop.permute.xlu0 %932
        %934 = vrot.lane.b32.xlu0 %v904, 112
        %v935 = vpop.permute.xlu0 %934
        %936 = vrot.lane.b32.xlu0 %v905, 112
        %v937 = vpop.permute.xlu0 %936
        %938 = vrot.lane.b32.xlu0 %v906, 112
        %v939 = vpop.permute.xlu0 %938
        %940 = vrot.lane.b32.xlu0 %v907, 112
        %v941 = vpop.permute.xlu0 %940
        %942 = vrot.lane.b32.xlu0 %v908, 112
        %v943 = vpop.permute.xlu0 %942
        %944 = vrot.lane.b32.xlu0 %v909, 112
        %v945 = vpop.permute.xlu0 %944
        %vm946 = vcmask 916480
        %v947 = vsel %vm946, %v923, %v925
        %v948 = vsel %vm946, %v925, %v927
        %v949 = vsel %vm946, %v929, %v931
        %v950 = vsel %vm946, %v931, %v933
        %v951 = vsel %vm946, %v935, %v937
        %v952 = vsel %vm946, %v937, %v939
        %v953 = vsel %vm946, %v941, %v943
        %v954 = vsel %vm946, %v943, %v945
        %v967 = vadd.f32 %v850, %v947
        %v968 = vadd.f32 %v851, %v948
        %v969 = vadd.f32 %v852, %v927
        %v970 = vadd.f32 %v853, %v949
        %v971 = vadd.f32 %v854, %v950
        %v972 = vadd.f32 %v855, %v933
        %v973 = vadd.f32 %v856, %v951
        %v974 = vadd.f32 %v857, %v952
        %v975 = vadd.f32 %v858, %v939
        %v976 = vadd.f32 %v859, %v953
        %v977 = vadd.f32 %v860, %v954
        %v978 = vadd.f32 %v861, %v945
        %979 = vset.pattern.permute.xlu0 4
        %980 = vperm.xlu0 %979, %v562
        %v981 = vpop.permute.xlu0 %980
        %983 = vset.pattern.permute.xlu0 4
        %984 = vperm.xlu0 %983, %v563
        %v985 = vpop.permute.xlu0 %984
        %987 = vset.pattern.permute.xlu0 4
        %988 = vperm.xlu0 %987, %v564
        %v989 = vpop.permute.xlu0 %988
        %991 = vset.pattern.permute.xlu0 4
        %992 = vperm.xlu0 %991, %v565
        %v993 = vpop.permute.xlu0 %992
        %v995 = vmul.f32 %v567, %v981
        %v996 = vmul.f32 %v568, %v981
        %v997 = vmul.f32 %v570, %v985
        %v998 = vmul.f32 %v571, %v985
        %v999 = vmul.f32 %v573, %v989
        %v1000 = vmul.f32 %v574, %v989
        %v1001 = vmul.f32 %v576, %v993
        %v1002 = vmul.f32 %v577, %v993
        %1011 = vrot.lane.b32.xlu0 %v995, 111
        %v1012 = vpop.permute.xlu0 %1011
        %1013 = vrot.lane.b32.xlu0 %v996, 111
        %v1014 = vpop.permute.xlu0 %1013
        %1015 = vrot.lane.b32.xlu0 %v997, 111
        %v1016 = vpop.permute.xlu0 %1015
        %1017 = vrot.lane.b32.xlu0 %v998, 111
        %v1018 = vpop.permute.xlu0 %1017
        %1019 = vrot.lane.b32.xlu0 %v999, 111
        %v1020 = vpop.permute.xlu0 %1019
        %1021 = vrot.lane.b32.xlu0 %v1000, 111
        %v1022 = vpop.permute.xlu0 %1021
        %1023 = vrot.lane.b32.xlu0 %v1001, 111
        %v1024 = vpop.permute.xlu0 %1023
        %1025 = vrot.lane.b32.xlu0 %v1002, 111
        %v1026 = vpop.permute.xlu0 %1025
        %v1027 = vsel %vm616, %v1012, %v1014
        %v1028 = vsel %vm616, %v1016, %v1018
        %v1029 = vsel %vm616, %v1020, %v1022
        %v1030 = vsel %vm616, %v1024, %v1026
        %v1043 = vadd.f32 %v967, %v1012
        %v1044 = vadd.f32 %v968, %v1027
        %v1045 = vadd.f32 %v969, %v1014
        %v1046 = vadd.f32 %v970, %v1016
        %v1047 = vadd.f32 %v971, %v1028
        %v1048 = vadd.f32 %v972, %v1018
        %v1049 = vadd.f32 %v973, %v1020
        %v1050 = vadd.f32 %v974, %v1029
        %v1051 = vadd.f32 %v975, %v1022
        %v1052 = vadd.f32 %v976, %v1024
        %v1053 = vadd.f32 %v977, %v1030
        %v1054 = vadd.f32 %v978, %v1026
        %v1055 = vld [vmem:[#allocation2 + $0x8] sm:$0xff]
        %v1056 = vld [vmem:[#allocation2 + $0x10] sm:$0xff]
        %v1057 = vld [vmem:[#allocation2 + $0x18] sm:$0xff]
        %v1058 = vld [vmem:[#allocation2 + $0x28] sm:$0xff]
        %v1059 = vld [vmem:[#allocation2 + $0x30] sm:$0xff]
        %v1060 = vld [vmem:[#allocation2 + $0x38] sm:$0xff]
        %v1061 = vld [vmem:[#allocation2 + $0x48] sm:$0xff]
        %v1062 = vld [vmem:[#allocation2 + $0x50] sm:$0xff]
        %v1063 = vld [vmem:[#allocation2 + $0x58] sm:$0xff]
        %v1064 = vld [vmem:[#allocation2 + $0x68] sm:$0xff]
        %v1065 = vld [vmem:[#allocation2 + $0x70] sm:$0xff]
        %v1066 = vld [vmem:[#allocation2 + $0x78] sm:$0xff]
        %1067 = vset.pattern.permute.xlu0 5
        %1068 = vperm.xlu0 %1067, %v562
        %v1069 = vpop.permute.xlu0 %1068
        %1071 = vset.pattern.permute.xlu0 5
        %1072 = vperm.xlu0 %1071, %v563
        %v1073 = vpop.permute.xlu0 %1072
        %1075 = vset.pattern.permute.xlu0 5
        %1076 = vperm.xlu0 %1075, %v564
        %v1077 = vpop.permute.xlu0 %1076
        %1079 = vset.pattern.permute.xlu0 5
        %1080 = vperm.xlu0 %1079, %v565
        %v1081 = vpop.permute.xlu0 %1080
        %v1083 = vmul.f32 %v1055, %v1069
        %v1084 = vmul.f32 %v1056, %v1069
        %v1085 = vmul.f32 %v1057, %v1069
        %v1086 = vmul.f32 %v1058, %v1073
        %v1087 = vmul.f32 %v1059, %v1073
        %v1088 = vmul.f32 %v1060, %v1073
        %v1089 = vmul.f32 %v1061, %v1077
        %v1090 = vmul.f32 %v1062, %v1077
        %v1091 = vmul.f32 %v1063, %v1077
        %v1092 = vmul.f32 %v1064, %v1081
        %v1093 = vmul.f32 %v1065, %v1081
        %v1094 = vmul.f32 %v1066, %v1081
        %1095 = vrot.lane.b32.xlu0 %v560, 1
        %v1096 = vpop.permute.xlu0 %1095
        %1097 = vrot.lane.b32.xlu0 %v561, 1
        %v1098 = vpop.permute.xlu0 %1097
        %vm1099 = vcmask 7168
        %v1100 = vsel %vm1099, %v1096, %v1098
        %v1104 = vmul.f32 %v1083, %v1096
        %v1105 = vmul.f32 %v1084, %v1100
        %v1106 = vmul.f32 %v1085, %v1098
        %v1107 = vmul.f32 %v1086, %v1096
        %v1108 = vmul.f32 %v1087, %v1100
        %v1109 = vmul.f32 %v1088, %v1098
        %v1110 = vmul.f32 %v1089, %v1096
        %v1111 = vmul.f32 %v1090, %v1100
        %v1112 = vmul.f32 %v1091, %v1098
        %v1113 = vmul.f32 %v1092, %v1096
        %v1114 = vmul.f32 %v1093, %v1100
        %v1115 = vmul.f32 %v1094, %v1098
        %1128 = vrot.lane.b32.xlu0 %v1104, 110
        %v1129 = vpop.permute.xlu0 %1128
        %1130 = vrot.lane.b32.xlu0 %v1105, 110
        %v1131 = vpop.permute.xlu0 %1130
        %1132 = vrot.lane.b32.xlu0 %v1106, 110
        %v1133 = vpop.permute.xlu0 %1132
        %1134 = vrot.lane.b32.xlu0 %v1107, 110
        %v1135 = vpop.permute.xlu0 %1134
        %1136 = vrot.lane.b32.xlu0 %v1108, 110
        %v1137 = vpop.permute.xlu0 %1136
        %1138 = vrot.lane.b32.xlu0 %v1109, 110
        %v1139 = vpop.permute.xlu0 %1138
        %1140 = vrot.lane.b32.xlu0 %v1110, 110
        %v1141 = vpop.permute.xlu0 %1140
        %1142 = vrot.lane.b32.xlu0 %v1111, 110
        %v1143 = vpop.permute.xlu0 %1142
        %1144 = vrot.lane.b32.xlu0 %v1112, 110
        %v1145 = vpop.permute.xlu0 %1144
        %1146 = vrot.lane.b32.xlu0 %v1113, 110
        %v1147 = vpop.permute.xlu0 %1146
        %1148 = vrot.lane.b32.xlu0 %v1114, 110
        %v1149 = vpop.permute.xlu0 %1148
        %1150 = vrot.lane.b32.xlu0 %v1115, 110
        %v1151 = vpop.permute.xlu0 %1150
        %vm1152 = vcmask 900096
        %v1153 = vsel %vm1152, %v1129, %v1131
        %v1154 = vsel %vm1152, %v1131, %v1133
        %v1155 = vsel %vm1152, %v1135, %v1137
        %v1156 = vsel %vm1152, %v1137, %v1139
        %v1157 = vsel %vm1152, %v1141, %v1143
        %v1158 = vsel %vm1152, %v1143, %v1145
        %v1159 = vsel %vm1152, %v1147, %v1149
        %v1160 = vsel %vm1152, %v1149, %v1151
        %v1173 = vadd.f32 %v1043, %v1129
        %v1174 = vadd.f32 %v1044, %v1153
        %v1175 = vadd.f32 %v1045, %v1154
        %v1176 = vadd.f32 %v1046, %v1135
        %v1177 = vadd.f32 %v1047, %v1155
        %v1178 = vadd.f32 %v1048, %v1156
        %v1179 = vadd.f32 %v1049, %v1141
        %v1180 = vadd.f32 %v1050, %v1157
        %v1181 = vadd.f32 %v1051, %v1158
        %v1182 = vadd.f32 %v1052, %v1147
        %v1183 = vadd.f32 %v1053, %v1159
        %v1184 = vadd.f32 %v1054, %v1160
        %1185 = vset.pattern.permute.xlu0 6
        %1186 = vperm.xlu0 %1185, %v562
        %v1187 = vpop.permute.xlu0 %1186
        %1189 = vset.pattern.permute.xlu0 6
        %1190 = vperm.xlu0 %1189, %v563
        %v1191 = vpop.permute.xlu0 %1190
        %1193 = vset.pattern.permute.xlu0 6
        %1194 = vperm.xlu0 %1193, %v564
        %v1195 = vpop.permute.xlu0 %1194
        %1197 = vset.pattern.permute.xlu0 6
        %1198 = vperm.xlu0 %1197, %v565
        %v1199 = vpop.permute.xlu0 %1198
        %v1201 = vmul.f32 %v1055, %v1187
        %v1202 = vmul.f32 %v1056, %v1187
        %v1203 = vmul.f32 %v1057, %v1187
        %v1204 = vmul.f32 %v1058, %v1191
        %v1205 = vmul.f32 %v1059, %v1191
        %v1206 = vmul.f32 %v1060, %v1191
        %v1207 = vmul.f32 %v1061, %v1195
        %v1208 = vmul.f32 %v1062, %v1195
        %v1209 = vmul.f32 %v1063, %v1195
        %v1210 = vmul.f32 %v1064, %v1199
        %v1211 = vmul.f32 %v1065, %v1199
        %v1212 = vmul.f32 %v1066, %v1199
        %1213 = vrot.lane.b32.xlu0 %v554, 15
        %v1214 = vpop.permute.xlu0 %1213
        %1215 = vrot.lane.b32.xlu0 %v555, 15
        %v1216 = vpop.permute.xlu0 %1215
        %vm1217 = vcmask 121856
        %v1218 = vsel %vm1217, %v1214, %v1216
        %v1222 = vmul.f32 %v1201, %v1214
        %v1223 = vmul.f32 %v1202, %v1218
        %v1224 = vmul.f32 %v1203, %v1216
        %v1225 = vmul.f32 %v1204, %v1214
        %v1226 = vmul.f32 %v1205, %v1218
        %v1227 = vmul.f32 %v1206, %v1216
        %v1228 = vmul.f32 %v1207, %v1214
        %v1229 = vmul.f32 %v1208, %v1218
        %v1230 = vmul.f32 %v1209, %v1216
        %v1231 = vmul.f32 %v1210, %v1214
        %v1232 = vmul.f32 %v1211, %v1218
        %v1233 = vmul.f32 %v1212, %v1216
        %1246 = vrot.lane.b32.xlu0 %v1222, 96
        %v1247 = vpop.permute.xlu0 %1246
        %1248 = vrot.lane.b32.xlu0 %v1223, 96
        %v1249 = vpop.permute.xlu0 %1248
        %1250 = vrot.lane.b32.xlu0 %v1224, 96
        %v1251 = vpop.permute.xlu0 %1250
        %1252 = vrot.lane.b32.xlu0 %v1225, 96
        %v1253 = vpop.permute.xlu0 %1252
        %1254 = vrot.lane.b32.xlu0 %v1226, 96
        %v1255 = vpop.permute.xlu0 %1254
        %1256 = vrot.lane.b32.xlu0 %v1227, 96
        %v1257 = vpop.permute.xlu0 %1256
        %1258 = vrot.lane.b32.xlu0 %v1228, 96
        %v1259 = vpop.permute.xlu0 %1258
        %1260 = vrot.lane.b32.xlu0 %v1229, 96
        %v1261 = vpop.permute.xlu0 %1260
        %1262 = vrot.lane.b32.xlu0 %v1230, 96
        %v1263 = vpop.permute.xlu0 %1262
        %1264 = vrot.lane.b32.xlu0 %v1231, 96
        %v1265 = vpop.permute.xlu0 %1264
        %1266 = vrot.lane.b32.xlu0 %v1232, 96
        %v1267 = vpop.permute.xlu0 %1266
        %1268 = vrot.lane.b32.xlu0 %v1233, 96
        %v1269 = vpop.permute.xlu0 %1268
        %vm1270 = vcmask 785408
        %v1271 = vsel %vm1270, %v1247, %v1249
        %v1272 = vsel %vm1270, %v1249, %v1251
        %v1273 = vsel %vm1270, %v1253, %v1255
        %v1274 = vsel %vm1270, %v1255, %v1257
        %v1275 = vsel %vm1270, %v1259, %v1261
        %v1276 = vsel %vm1270, %v1261, %v1263
        %v1277 = vsel %vm1270, %v1265, %v1267
        %v1278 = vsel %vm1270, %v1267, %v1269
        %v1291 = vadd.f32 %v1173, %v1247
        %v1292 = vadd.f32 %v1174, %v1271
        %v1293 = vadd.f32 %v1175, %v1272
        %v1294 = vadd.f32 %v1176, %v1253
        %v1295 = vadd.f32 %v1177, %v1273
        %v1296 = vadd.f32 %v1178, %v1274
        %v1297 = vadd.f32 %v1179, %v1259
        %v1298 = vadd.f32 %v1180, %v1275
        %v1299 = vadd.f32 %v1181, %v1276
        %v1300 = vadd.f32 %v1182, %v1265
        %v1301 = vadd.f32 %v1183, %v1277
        %v1302 = vadd.f32 %v1184, %v1278
        %1303 = vset.pattern.permute.xlu0 7
        %1304 = vperm.xlu0 %1303, %v562
        %v1305 = vpop.permute.xlu0 %1304
        %1307 = vset.pattern.permute.xlu0 7
        %1308 = vperm.xlu0 %1307, %v563
        %v1309 = vpop.permute.xlu0 %1308
        %1311 = vset.pattern.permute.xlu0 7
        %1312 = vperm.xlu0 %1311, %v564
        %v1313 = vpop.permute.xlu0 %1312
        %1315 = vset.pattern.permute.xlu0 7
        %1316 = vperm.xlu0 %1315, %v565
        %v1317 = vpop.permute.xlu0 %1316
        %v1319 = vmul.f32 %v1055, %v1305
        %v1320 = vmul.f32 %v1056, %v1305
        %v1321 = vmul.f32 %v1057, %v1305
        %v1322 = vmul.f32 %v1058, %v1309
        %v1323 = vmul.f32 %v1059, %v1309
        %v1324 = vmul.f32 %v1060, %v1309
        %v1325 = vmul.f32 %v1061, %v1313
        %v1326 = vmul.f32 %v1062, %v1313
        %v1327 = vmul.f32 %v1063, %v1313
        %v1328 = vmul.f32 %v1064, %v1317
        %v1329 = vmul.f32 %v1065, %v1317
        %v1330 = vmul.f32 %v1066, %v1317
        %1343 = vrot.lane.b32.xlu0 %v1319, 95
        %v1344 = vpop.permute.xlu0 %1343
        %1345 = vrot.lane.b32.xlu0 %v1320, 95
        %v1346 = vpop.permute.xlu0 %1345
        %1347 = vrot.lane.b32.xlu0 %v1321, 95
        %v1348 = vpop.permute.xlu0 %1347
        %1349 = vrot.lane.b32.xlu0 %v1322, 95
        %v1350 = vpop.permute.xlu0 %1349
        %1351 = vrot.lane.b32.xlu0 %v1323, 95
        %v1352 = vpop.permute.xlu0 %1351
        %1353 = vrot.lane.b32.xlu0 %v1324, 95
        %v1354 = vpop.permute.xlu0 %1353
        %1355 = vrot.lane.b32.xlu0 %v1325, 95
        %v1356 = vpop.permute.xlu0 %1355
        %1357 = vrot.lane.b32.xlu0 %v1326, 95
        %v1358 = vpop.permute.xlu0 %1357
        %1359 = vrot.lane.b32.xlu0 %v1327, 95
        %v1360 = vpop.permute.xlu0 %1359
        %1361 = vrot.lane.b32.xlu0 %v1328, 95
        %v1362 = vpop.permute.xlu0 %1361
        %1363 = vrot.lane.b32.xlu0 %v1329, 95
        %v1364 = vpop.permute.xlu0 %1363
        %1365 = vrot.lane.b32.xlu0 %v1330, 95
        %v1366 = vpop.permute.xlu0 %1365
        %vm1367 = vcmask 777216
        %v1368 = vsel %vm1367, %v1344, %v1346
        %v1369 = vsel %vm1367, %v1346, %v1348
        %v1370 = vsel %vm1367, %v1350, %v1352
        %v1371 = vsel %vm1367, %v1352, %v1354
        %v1372 = vsel %vm1367, %v1356, %v1358
        %v1373 = vsel %vm1367, %v1358, %v1360
        %v1374 = vsel %vm1367, %v1362, %v1364
        %v1375 = vsel %vm1367, %v1364, %v1366
        %v1388 = vadd.f32 %v1291, %v1344
        %v1389 = vadd.f32 %v1292, %v1368
        %v1390 = vadd.f32 %v1293, %v1369
        %v1391 = vadd.f32 %v1294, %v1350
        %v1392 = vadd.f32 %v1295, %v1370
        %v1393 = vadd.f32 %v1296, %v1371
        %v1394 = vadd.f32 %v1297, %v1356
        %v1395 = vadd.f32 %v1298, %v1372
        %v1396 = vadd.f32 %v1299, %v1373
        %v1397 = vadd.f32 %v1300, %v1362
        %v1398 = vadd.f32 %v1301, %v1374
        %v1399 = vadd.f32 %v1302, %v1375
        %1400 = vset.pattern.permute.xlu0 8
        %1401 = vperm.xlu0 %1400, %v562
        %v1402 = vpop.permute.xlu0 %1401
        %1404 = vset.pattern.permute.xlu0 8
        %1405 = vperm.xlu0 %1404, %v563
        %v1406 = vpop.permute.xlu0 %1405
        %1408 = vset.pattern.permute.xlu0 8
        %1409 = vperm.xlu0 %1408, %v564
        %v1410 = vpop.permute.xlu0 %1409
        %1412 = vset.pattern.permute.xlu0 8
        %1413 = vperm.xlu0 %1412, %v565
        %v1414 = vpop.permute.xlu0 %1413
        %v1416 = vmul.f32 %v1055, %v1402
        %v1417 = vmul.f32 %v1056, %v1402
        %v1418 = vmul.f32 %v1057, %v1402
        %v1419 = vmul.f32 %v1058, %v1406
        %v1420 = vmul.f32 %v1059, %v1406
        %v1421 = vmul.f32 %v1060, %v1406
        %v1422 = vmul.f32 %v1061, %v1410
        %v1423 = vmul.f32 %v1062, %v1410
        %v1424 = vmul.f32 %v1063, %v1410
        %v1425 = vmul.f32 %v1064, %v1414
        %v1426 = vmul.f32 %v1065, %v1414
        %v1427 = vmul.f32 %v1066, %v1414
        %1428 = vrot.lane.b32.xlu0 %v560, 17
        %v1429 = vpop.permute.xlu0 %1428
        %1430 = vrot.lane.b32.xlu0 %v561, 17
        %v1431 = vpop.permute.xlu0 %1430
        %vm1432 = vcmask 138240
        %v1433 = vsel %vm1432, %v1429, %v1431
        %v1437 = vmul.f32 %v1416, %v1429
        %v1438 = vmul.f32 %v1417, %v1433
        %v1439 = vmul.f32 %v1418, %v1431
        %v1440 = vmul.f32 %v1419, %v1429
        %v1441 = vmul.f32 %v1420, %v1433
        %v1442 = vmul.f32 %v1421, %v1431
        %v1443 = vmul.f32 %v1422, %v1429
        %v1444 = vmul.f32 %v1423, %v1433
        %v1445 = vmul.f32 %v1424, %v1431
        %v1446 = vmul.f32 %v1425, %v1429
        %v1447 = vmul.f32 %v1426, %v1433
        %v1448 = vmul.f32 %v1427, %v1431
        %1461 = vrot.lane.b32.xlu0 %v1437, 94
        %v1462 = vpop.permute.xlu0 %1461
        %1463 = vrot.lane.b32.xlu0 %v1438, 94
        %v1464 = vpop.permute.xlu0 %1463
        %1465 = vrot.lane.b32.xlu0 %v1439, 94
        %v1466 = vpop.permute.xlu0 %1465
        %1467 = vrot.lane.b32.xlu0 %v1440, 94
        %v1468 = vpop.permute.xlu0 %1467
        %1469 = vrot.lane.b32.xlu0 %v1441, 94
        %v1470 = vpop.permute.xlu0 %1469
        %1471 = vrot.lane.b32.xlu0 %v1442, 94
        %v1472 = vpop.permute.xlu0 %1471
        %1473 = vrot.lane.b32.xlu0 %v1443, 94
        %v1474 = vpop.permute.xlu0 %1473
        %1475 = vrot.lane.b32.xlu0 %v1444, 94
        %v1476 = vpop.permute.xlu0 %1475
        %1477 = vrot.lane.b32.xlu0 %v1445, 94
        %v1478 = vpop.permute.xlu0 %1477
        %1479 = vrot.lane.b32.xlu0 %v1446, 94
        %v1480 = vpop.permute.xlu0 %1479
        %1481 = vrot.lane.b32.xlu0 %v1447, 94
        %v1482 = vpop.permute.xlu0 %1481
        %1483 = vrot.lane.b32.xlu0 %v1448, 94
        %v1484 = vpop.permute.xlu0 %1483
        %vm1485 = vcmask 769024
        %v1486 = vsel %vm1485, %v1462, %v1464
        %v1487 = vsel %vm1485, %v1464, %v1466
        %v1488 = vsel %vm1485, %v1468, %v1470
        %v1489 = vsel %vm1485, %v1470, %v1472
        %v1490 = vsel %vm1485, %v1474, %v1476
        %v1491 = vsel %vm1485, %v1476, %v1478
        %v1492 = vsel %vm1485, %v1480, %v1482
        %v1493 = vsel %vm1485, %v1482, %v1484
        %v1506 = vadd.f32 %v1388, %v1462
        %v1507 = vadd.f32 %v1389, %v1486
        %v1508 = vadd.f32 %v1390, %v1487
        %v1509 = vadd.f32 %v1391, %v1468
        %v1510 = vadd.f32 %v1392, %v1488
        %v1511 = vadd.f32 %v1393, %v1489
        %v1512 = vadd.f32 %v1394, %v1474
        %v1513 = vadd.f32 %v1395, %v1490
        %v1514 = vadd.f32 %v1396, %v1491
        %v1515 = vadd.f32 %v1397, %v1480
        %v1516 = vadd.f32 %v1398, %v1492
        %v1517 = vadd.f32 %v1399, %v1493
        %v1518 = vld [vmem:[%s5] sm:$0xff]
        %v1519 = vld [vmem:[%s5 + $0x8] sm:$0xff]
        %v1520 = vld [vmem:[%s5 + $0x10] sm:$0xff]
        %v1521 = vld [vmem:[%s5 + $0x18] sm:$0xff]
        %1523 = vset.pattern.permute.xlu0 0
        %1524 = vperm.xlu0 %1523, %v1518
        %v1525 = vpop.permute.xlu0 %1524
        %1528 = vset.pattern.permute.xlu0 0
        %1529 = vperm.xlu0 %1528, %v1519
        %v1530 = vpop.permute.xlu0 %1529
        %1533 = vset.pattern.permute.xlu0 0
        %1534 = vperm.xlu0 %1533, %v1520
        %v1535 = vpop.permute.xlu0 %1534
        %1538 = vset.pattern.permute.xlu0 0
        %1539 = vperm.xlu0 %1538, %v1521
        %v1540 = vpop.permute.xlu0 %1539
        %v1542 = vmul.f32 %v1506, %v1525
        %v1543 = vmul.f32 %v1507, %v1525
        %v1544 = vmul.f32 %v1508, %v1525
        %v1545 = vmul.f32 %v1509, %v1530
        %v1546 = vmul.f32 %v1510, %v1530
        %v1547 = vmul.f32 %v1511, %v1530
        %v1548 = vmul.f32 %v1512, %v1535
        %v1549 = vmul.f32 %v1513, %v1535
        %v1550 = vmul.f32 %v1514, %v1535
        %v1551 = vmul.f32 %v1515, %v1540
        %v1552 = vmul.f32 %v1516, %v1540
        %v1553 = vmul.f32 %v1517, %v1540
        %v1554 = vld [vmem:[%s6] sm:$0xff]
        %v1555 = vld [vmem:[%s6 + $0x8] sm:$0xff]
        %v1556 = vld [vmem:[%s6 + $0x10] sm:$0xff]
        %v1557 = vld [vmem:[%s6 + $0x18] sm:$0xff]
        %1559 = vset.pattern.permute.xlu0 0
        %1560 = vperm.xlu0 %1559, %v1554
        %v1561 = vpop.permute.xlu0 %1560
        %1564 = vset.pattern.permute.xlu0 0
        %1565 = vperm.xlu0 %1564, %v1555
        %v1566 = vpop.permute.xlu0 %1565
        %1569 = vset.pattern.permute.xlu0 0
        %1570 = vperm.xlu0 %1569, %v1556
        %v1571 = vpop.permute.xlu0 %1570
        %1574 = vset.pattern.permute.xlu0 0
        %1575 = vperm.xlu0 %1574, %v1557
        %v1576 = vpop.permute.xlu0 %1575
        %v1578 = vadd.f32 %v1542, %v1561
        %v1579 = vadd.f32 %v1543, %v1561
        %v1580 = vadd.f32 %v1544, %v1561
        %v1581 = vadd.f32 %v1545, %v1566
        %v1582 = vadd.f32 %v1546, %v1566
        %v1583 = vadd.f32 %v1547, %v1566
        %v1584 = vadd.f32 %v1548, %v1571
        %v1585 = vadd.f32 %v1549, %v1571
        %v1586 = vadd.f32 %v1550, %v1571
        %v1587 = vadd.f32 %v1551, %v1576
        %v1588 = vadd.f32 %v1552, %v1576
        %v1589 = vadd.f32 %v1553, %v1576
        %v1590 = vmax.f32 %v1578, 0.0
        %v1591 = vmax.f32 %v1579, 0.0
        %v1592 = vmax.f32 %v1580, 0.0
        %v1593 = vmax.f32 %v1581, 0.0
        %v1594 = vmax.f32 %v1582, 0.0
        %v1595 = vmax.f32 %v1583, 0.0
        %v1596 = vmax.f32 %v1584, 0.0
        %v1597 = vmax.f32 %v1585, 0.0
        %v1598 = vmax.f32 %v1586, 0.0
        %v1599 = vmax.f32 %v1587, 0.0
        %v1600 = vmax.f32 %v1588, 0.0
        %v1601 = vmax.f32 %v1589, 0.0
        %v1602 = vld [vmem:[%s7] sm:$0xff]
        %1615 = vrot.lane.b32.xlu0 %v1590, 17
        %v1616 = vpop.permute.xlu0 %1615
        %1617 = vrot.lane.b32.xlu0 %v1591, 17
        %v1618 = vpop.permute.xlu0 %1617
        %1619 = vrot.lane.b32.xlu0 %v1592, 17
        %v1620 = vpop.permute.xlu0 %1619
        %1621 = vrot.lane.b32.xlu0 %v1593, 17
        %v1622 = vpop.permute.xlu0 %1621
        %1623 = vrot.lane.b32.xlu0 %v1594, 17
        %v1624 = vpop.permute.xlu0 %1623
        %1625 = vrot.lane.b32.xlu0 %v1595, 17
        %v1626 = vpop.permute.xlu0 %1625
        %1627 = vrot.lane.b32.xlu0 %v1596, 17
        %v1628 = vpop.permute.xlu0 %1627
        %1629 = vrot.lane.b32.xlu0 %v1597, 17
        %v1630 = vpop.permute.xlu0 %1629
        %1631 = vrot.lane.b32.xlu0 %v1598, 17
        %v1632 = vpop.permute.xlu0 %1631
        %1633 = vrot.lane.b32.xlu0 %v1599, 17
        %v1634 = vpop.permute.xlu0 %1633
        %1635 = vrot.lane.b32.xlu0 %v1600, 17
        %v1636 = vpop.permute.xlu0 %1635
        %1637 = vrot.lane.b32.xlu0 %v1601, 17
        %v1638 = vpop.permute.xlu0 %1637
        %v1639 = vsel %vm1432, %v1616, %v1618
        %v1640 = vsel %vm1432, %v1618, %v1620
        %v1641 = vsel %vm1432, %v1622, %v1624
        %v1642 = vsel %vm1432, %v1624, %v1626
        %v1643 = vsel %vm1432, %v1628, %v1630
        %v1644 = vsel %vm1432, %v1630, %v1632
        %v1645 = vsel %vm1432, %v1634, %v1636
        %v1646 = vsel %vm1432, %v1636, %v1638
        %vm1655 = vcmask 261120
        %v1657 = vsel %vm1655, %v1602, 0
        %1659 = vmatpush.msra.mxu0 0.0
        %1660 = vmatpush.msra.mxu0 0.0
        %1661 = vmatpush.msra.mxu0 0.0
        %1662 = vmatpush.msra.mxu0 0.0
        %1663 = vmatpush.msra.mxu0 0.0
        %1664 = vmatpush.msra.mxu0 0.0
        %1665 = vmatpush.msra.mxu0 0.0
        %1666 = vmatpush.msra.mxu0 0.0
        %1667 = vmatpush.msra.mxu0 0.0
        %1668 = vmatpush.msra.mxu0 0.0
        %1669 = vmatpush.msra.mxu0 0.0
        %1670 = vmatpush.msra.mxu0 0.0
        %1671 = vmatpush.msra.mxu0 %v1645
        %1672 = vmatpush.msra.mxu0 %v1643
        %1673 = vmatpush.msra.mxu0 %v1641
        %1674 = vmatpush.msra.mxu0 %v1639
        %1675 = vmatmul.f32.gmra.mxu0 %v1657
        %v1676 = vpop.f32.mrf.mxu0
        %v1677 = vadd.f32 0.0, %v1676
        %1678 = vdwg.mxu0
        %1679 = vmatpush.msra.mxu0 0.0
        %1680 = vmatpush.msra.mxu0 0.0
        %1681 = vmatpush.msra.mxu0 0.0
        %1682 = vmatpush.msra.mxu0 0.0
        %1683 = vmatpush.msra.mxu0 0.0
        %1684 = vmatpush.msra.mxu0 0.0
        %1685 = vmatpush.msra.mxu0 0.0
        %1686 = vmatpush.msra.mxu0 0.0
        %1687 = vmatpush.msra.mxu0 0.0
        %1688 = vmatpush.msra.mxu0 0.0
        %1689 = vmatpush.msra.mxu0 0.0
        %1690 = vmatpush.msra.mxu0 0.0
        %1691 = vmatpush.msra.mxu0 %v1646
        %1692 = vmatpush.msra.mxu0 %v1644
        %1693 = vmatpush.msra.mxu0 %v1642
        %1694 = vmatpush.msra.mxu0 %v1640
        %1695 = vmatmul.f32.gmra.mxu0 %v1657
        %v1696 = vpop.f32.mrf.mxu0
        %v1697 = vadd.f32 0.0, %v1696
        %1698 = vdwg.mxu0
        %v1699 = vld [vmem:[%s8] sm:$0xff]
        %1701 = vset.pattern.permute.xlu0 0
        %1702 = vperm.xlu0 %1701, %v1699
        %v1703 = vpop.permute.xlu0 %1702
        %v1705 = vmul.f32 %v1677, %v1703
        %v1706 = vmul.f32 %v1697, %v1703
        %v1707 = vld [vmem:[%s9] sm:$0xff]
        %1709 = vset.pattern.permute.xlu0 0
        %1710 = vperm.xlu0 %1709, %v1707
        %v1711 = vpop.permute.xlu0 %1710
        %v1713 = vadd.f32 %v1705, %v1711
        %v1714 = vadd.f32 %v1706, %v1711
        %v1715 = vadd.f32 %v1713, %v358
        %v1716 = vadd.f32 %v1714, %v359
        %1717 = vst [vmem:[%s352] sm:$0xff] %v1715
        %1718 = vst [vmem:[%s352 + $0x8] sm:$0xff] %v1716
        %s1719 = sand.u32 %s247, 1
        %s1720 = scalar_lea.sflag [#allocation4], %s1719
        %s1721 = sand.u32 %s247, 1
        %s1722 = smul.addr %s1721, 16
        %s1723 = scalar_lea.vmem [#allocation3], %s1722
        // Predicated region
        $region61: #{tpu_custom_call.1} parent=59 // pred_check
          %p1724 = pneg %p257
        $region62: #{tpu_custom_call.1} parent=59 // pred_check_branch
          %1726 = sbr.rel (%p1724) target = $region64
        $region63: #{tpu_custom_call.1} parent=59 // pred_region
          %1728 = vsyncadd %s1720, 0
          %s1729 = smul.addr %s24, 2
          %s1730 = smul.addr %s1729, 8
          %s1731 = scalar_lea.hbm %s10, %s1730
          %s1733 = sshll.u32 %s1723, 4
          %s1734 = int_to_ptr.vmem [resolvable:$true] %s1733
          %s1735 = sshll.u32 %s1731, 4
          %s1736 = int_to_ptr.hbm [resolvable:$true] %s1735
          %1738 = dma.vmem_to_hbm [thread:$0]  %s1734, 256, %s1736, %s1720
        $region64: #{tpu_custom_call.1} parent=59 // pred_fallthru
          _
      $region60: #{tpu_custom_call.1} parent=5 // pred_fallthru
        _
      %p1739 = scmp.le.s32.totalorder 2, %s19
      // Predicated region
      $region65: #{tpu_custom_call.1} parent=5 // pred_check
        %p1740 = pneg %p1739
      $region66: #{tpu_custom_call.1} parent=5 // pred_check_branch
        %1742 = sbr.rel (%p1740) target = $region68
      $region67: #{tpu_custom_call.1} parent=5 // pred_region
        %s1743 = ssub.s32 %s19, 2
        // Predicated region
        $region69: #{tpu_custom_call.1} parent=67 // pred_check
          %p1744 = pneg %p263
        $region70: #{tpu_custom_call.1} parent=67 // pred_check_branch
          %1746 = sbr.rel (%p1744) target = $region72
        $region71: #{tpu_custom_call.1} parent=67 // pred_region
          %s1747 = sand.u32 %s248, 1
          %s1748 = scalar_lea.sflag [#allocation4], %s1747
          %s1749 = sand.u32 %s248, 1
          %s1750 = smul.addr %s1749, 16
          %s1751 = scalar_lea.vmem [#allocation3], %s1750
          %1753 = dma.done %s1748, 256
        $region72: #{tpu_custom_call.1} parent=67 // pred_fallthru
          _
      $region68: #{tpu_custom_call.1} parent=5 // pred_fallthru
        _
    $region6: #{tpu_custom_call.1} parent=1 // loop_footer
      %s23 = sadd.s32 1, %s19
    $region7: #{tpu_custom_call.1} parent=1 // loop_footer_branch
      %18 = sbr.rel target = $region3
    $region8: #{tpu_custom_call.1} parent=1 // loop_exit
      _
    %1754 = vsyncpa [#allocation4], 1
    %s1755 = scalar_lea.sflag [#allocation4], 1
    %1756 = vsyncpa %s1755, 1

</llo_original>
